<compile_context>
chip_gen: v6e
topology: v6e:2x2x1
jax: 0.10.0
libtpu: 0.0.40
codegen_flags: <defaults>
</compile_context>

<pallas_src>
import functools

import jax
import jax.numpy as jnp
from jax import lax
from jax.experimental import pallas as pl
from jax.experimental.pallas import tpu as pltpu


def _bi_gru_kernel(lens_ref, x_ref, wih_ref, whh_ref, bih_ref, bhh_ref,
                   out_ref, hfin_ref, gi_scratch, h_scratch,
                   *, hidden_dim, chunk, n_chunks, b_pad):
    H = hidden_dim
    TT = chunk
    Bp = b_pad

    d = pl.program_id(0)            # 0 = forward, 1 = backward
    c = pl.program_id(1)            # grid step along the chunked time axis

    @pl.when(c == 0)
    def _():
        h_scratch[...] = jnp.zeros_like(h_scratch)

    # Which time-chunk of the sequence this grid step covers.  The backward
    # direction walks chunks (and steps inside each chunk) in reverse.
    chunk_idx = (1 - d) * c + d * (n_chunks - 1 - c)
    t_base = chunk_idx * TT

    # ---- hoisted input projection: ONE (TT*Bp, F) x (F, 3H) MXU matmul ----
    gi_all = jnp.dot(x_ref[...], wih_ref[...],
                     preferred_element_type=jnp.float32)
    gi_scratch[...] = gi_all + bih_ref[...]            # fold b_ih once/chunk

    whh = whh_ref[...]                                  # (H, 3H) bf16
    bhh = jnp.broadcast_to(bhh_ref[...], (Bp, 3 * H))   # hoisted broadcast
    lens = lens_ref[...]                                # (Bp, 1) int32

    def step(s, h):
        # within-chunk time (reversed for the backward direction)
        local_t = (1 - d) * s + d * (TT - 1 - s)
        g_t = t_base + local_t                          # global time index
        row = pl.multiple_of(local_t * Bp, Bp)          # 8-row aligned

        gi = gi_scratch[pl.ds(row, Bp), :]              # (Bp, 3H) f32
        gh = jnp.dot(h.astype(whh.dtype), whh,
                     preferred_element_type=jnp.float32) + bhh

        r = jax.nn.sigmoid(gi[:, 0:H] + gh[:, 0:H])
        z = jax.nn.sigmoid(gi[:, H:2 * H] + gh[:, H:2 * H])
        n = jnp.tanh(gi[:, 2 * H:3 * H] + r * gh[:, 2 * H:3 * H])
        h_new = (1.0 - z) * n + z * h

        # packed-sequence semantics: padded steps keep h and emit zeros.
        m = (g_t < lens).astype(jnp.float32)            # (Bp, 1)
        h_out = m * h_new
        out_ref[pl.ds(row, Bp), :] = h_out.astype(out_ref.dtype)
        return h_out + (1.0 - m) * h

    h_final = lax.fori_loop(0, TT, step, h_scratch[...],
                            unroll=True if TT <= 16 else 8)
    h_scratch[...] = h_final

    @pl.when(c == pl.num_programs(1) - 1)
    def _():
        hfin_ref[...] = h_final.astype(hfin_ref.dtype)


def bi_gru_dynamic(input_seqs, input_lens, params, *, time_chunk=32):
    """input_seqs: (B, T, F); input_lens: (B,) int32 (sorted descending)."""
    B, T, F = input_seqs.shape
    H = params["wih"].shape[-1] // 3

    TT = min(time_chunk, T)                 # time steps per grid step
    NC = -(-T // TT)                        # number of chunks
    T_pad = NC * TT
    Bp = ((B + 7) // 8) * 8                 # sublane-align the batch

    # (B, T, F) -> time-major, pad, flatten rows -> (T_pad*Bp, F) in bf16.
    x = jnp.transpose(input_seqs, (1, 0, 2)).astype(jnp.float32)
    x = jnp.pad(x, ((0, T_pad - T), (0, Bp - B), (0, 0)))
    x_flat = x.reshape(T_pad * Bp, F).astype(jnp.bfloat16)

    lens = jnp.pad(input_lens.astype(jnp.int32), (0, Bp - B)).reshape(Bp, 1)

    wih = params["wih"].astype(jnp.bfloat16)   # (2, F, 3H)
    whh = params["whh"].astype(jnp.bfloat16)   # (2, H, 3H)
    bih = params["bih"].astype(jnp.float32)    # (2, 1, 3H)
    bhh = params["bhh"].astype(jnp.float32)    # (2, 1, 3H)

    def chunk_map(d, c):                       # flip chunk order for backward
        return ((1 - d) * c + d * (NC - 1 - c), 0)

    kernel = functools.partial(_bi_gru_kernel, hidden_dim=H, chunk=TT,
                               n_chunks=NC, b_pad=Bp)

    out_dir, hfin = pl.pallas_call(
        kernel,
        out_shape=(
            jax.ShapeDtypeStruct((2, T_pad * Bp, H), jnp.float32),
            jax.ShapeDtypeStruct((2, Bp, H), jnp.float32),
        ),
        grid_spec=pltpu.PrefetchScalarGridSpec(
            num_scalar_prefetch=0,
            grid=(2, NC),
            in_specs=[
                pl.BlockSpec((Bp, 1), lambda d, c: (0, 0)),               # lens
                pl.BlockSpec((TT * Bp, F), chunk_map),                    # x chunk
                pl.BlockSpec((None, F, 3 * H), lambda d, c: (d, 0, 0)),   # W_ih
                pl.BlockSpec((None, H, 3 * H), lambda d, c: (d, 0, 0)),   # W_hh
                pl.BlockSpec((None, 1, 3 * H), lambda d, c: (d, 0, 0)),   # b_ih
                pl.BlockSpec((None, 1, 3 * H), lambda d, c: (d, 0, 0)),   # b_hh
            ],
            out_specs=[
                pl.BlockSpec((None, TT * Bp, H),
                             lambda d, c: (d, (1 - d) * c + d * (NC - 1 - c), 0)),
                pl.BlockSpec((None, Bp, H), lambda d, c: (d, 0, 0)),
            ],
            scratch_shapes=[
                pltpu.VMEM((TT * Bp, 3 * H), jnp.float32),   # gi for the chunk
                pltpu.VMEM((Bp, H), jnp.float32),            # recurrent hidden
            ],
        ),
        compiler_params=pltpu.CompilerParams(
            dimension_semantics=("parallel", "arbitrary"),
            vmem_limit_bytes=32 * 1024 * 1024,
        ),
    )(lens, x_flat, wih, whh, bih, bhh)

    # Sum the two directions (as the PyTorch module does) and go batch-major.
    out = out_dir.reshape(2, T_pad, Bp, H)[:, :T, :B]       # (2, T, B, H)
    outputs = jnp.transpose(out[0] + out[1], (1, 0, 2))      # (B, T, H)
    hidden = jnp.transpose(hfin[:, :B], (1, 0, 2))           # (B, 2, H)
    return outputs, hidden, input_lens


def init_params(key, feat_dim, hidden_dim):
    """Deterministic init matching nn.GRU(feat_dim, hidden_dim, 1, bidirectional=True)."""
    bound = 1.0 / float(hidden_dim) ** 0.5
    keys = jax.random.split(key, 8)

    def u(kk, shape):
        return jax.random.uniform(kk, shape, jnp.float32, minval=-bound, maxval=bound)

    # PyTorch shapes: weight_ih (3H, F), weight_hh (3H, H), biases (3H,), per direction.
    wih = jnp.stack([u(keys[0], (3 * hidden_dim, feat_dim)).T,
                     u(keys[4], (3 * hidden_dim, feat_dim)).T])          # (2, F, 3H)
    whh = jnp.stack([u(keys[1], (3 * hidden_dim, hidden_dim)).T,
                     u(keys[5], (3 * hidden_dim, hidden_dim)).T])        # (2, H, 3H)
    bih = jnp.stack([u(keys[2], (1, 3 * hidden_dim)),
                     u(keys[6], (1, 3 * hidden_dim))])                   # (2, 1, 3H)
    bhh = jnp.stack([u(keys[3], (1, 3 * hidden_dim)),
                     u(keys[7], (1, 3 * hidden_dim))])                   # (2, 1, 3H)
    return dict(wih=wih, whh=whh, bih=bih, bhh=bhh)


def _ref_bi_gru(input_seqs, input_lens, params, matmul_dtype=jnp.float32):
    """Pure-JAX reference (lax.scan).  matmul_dtype=bfloat16 emulates the
    kernel's bf16 MXU operands (accumulation / gate math stay f32)."""
    B, T, F = input_seqs.shape
    H = params["wih"].shape[-1] // 3
    cast = lambda a: a.astype(matmul_dtype).astype(jnp.float32)

    x = cast(jnp.transpose(input_seqs, (1, 0, 2)))
    mask = (jnp.arange(T)[:, None] < input_lens[None, :]).astype(jnp.float32)[:, :, None]

    def make_step(d):
        wih, whh = cast(params["wih"][d]), cast(params["whh"][d])
        bih, bhh = params["bih"][d], params["bhh"][d]

        def f(h, xm):
            xt, mt = xm
            gi = xt @ wih + bih
            gh = cast(h) @ whh + bhh
            r = jax.nn.sigmoid(gi[:, :H] + gh[:, :H])
            z = jax.nn.sigmoid(gi[:, H:2 * H] + gh[:, H:2 * H])
            n = jnp.tanh(gi[:, 2 * H:] + r * gh[:, 2 * H:])
            hn = (1.0 - z) * n + z * h
            hnext = mt * hn + (1.0 - mt) * h
            return hnext, mt * hn
        return f

    h0 = jnp.zeros((B, H), jnp.float32)
    hf, out_f = lax.scan(make_step(0), h0, (x, mask))
    hb, out_b_rev = lax.scan(make_step(1), h0, (x[::-1], mask[::-1]))
    outputs = jnp.transpose(out_f + out_b_rev[::-1], (1, 0, 2))
    hidden = jnp.stack([hf, hb], axis=1)
    return outputs, hidden


if __name__ == "__main__":
    key = jax.random.PRNGKey(0)
    B, T, F, H = 3, 8, 16, 32
    kx, kp = jax.random.split(key)

    input_seqs = jax.random.normal(kx, (B, T, F), jnp.float32)
    # pack_padded_sequence(enforce_sorted=True) expects descending lengths.
    input_lens = jnp.array([8, 6, 3], jnp.int32)
    params = init_params(kp, F, H)

    outputs, hidden, out_lens = bi_gru_dynamic(input_seqs, input_lens, params)
    jax.block_until_ready((outputs, hidden))

    assert outputs.shape == (B, T, H) and hidden.shape == (B, 2, H)

    # Tight check against a reference with the same bf16 matmul operands.
    ref_out, ref_hid = _ref_bi_gru(input_seqs, input_lens, params, jnp.bfloat16)
    assert jnp.allclose(outputs, ref_out, atol=1e-2, rtol=1e-2)
    assert jnp.allclose(hidden, ref_hid, atol=1e-2, rtol=1e-2)

    # Fidelity check against the full-f32 (PyTorch-equivalent) reference;
    # tolerance reflects bf16 MXU operands.
    ref_out32, ref_hid32 = _ref_bi_gru(input_seqs, input_lens, params, jnp.float32)
    assert jnp.allclose(outputs, ref_out32, atol=1e-1, rtol=1e-1)
    assert jnp.allclose(hidden, ref_hid32, atol=1e-1, rtol=1e-1)

    print("KERNEL_OK")
</pallas_src>

<mosaic_0001>
module attributes {stable_mosaic.version = 11 : i64} {
  func.func @_bi_gru_kernel(%arg0: i32, %arg1: i32, %arg2: memref<8x1xi32, #tpu.memory_space<vmem>>, %arg3: memref<64x16xbf16, #tpu.memory_space<vmem>>, %arg4: memref<1x16x96xbf16, #tpu.memory_space<vmem>>, %arg5: memref<1x32x96xbf16, #tpu.memory_space<vmem>>, %arg6: memref<1x1x96xf32, #tpu.memory_space<vmem>>, %arg7: memref<1x1x96xf32, #tpu.memory_space<vmem>>, %arg8: memref<1x64x32xf32, #tpu.memory_space<vmem>>, %arg9: memref<1x8x32xf32, #tpu.memory_space<vmem>>, %arg10: memref<64x96xf32, #tpu.memory_space<vmem>>, %arg11: memref<8x32xf32, #tpu.memory_space<vmem>>) attributes {dimension_semantics = [#tpu.dimension_semantics<parallel>, #tpu.dimension_semantics<arbitrary>], iteration_bounds = array<i64: 2, 1>, scalar_prefetch = 0 : i64, scratch_operands = 2 : i64, tpu.core_type = #tpu.core_type<tc>, window_params = [{pipeline_mode = #tpu.pipeline_mode<synchronous>, transform_indices = @transform_0, window_bounds = array<i64: 8, 1>}, {transform_indices = @transform_1, window_bounds = array<i64: 64, 16>}, {transform_indices = @transform_2, window_bounds = array<i64: 1, 16, 96>}, {transform_indices = @transform_3, window_bounds = array<i64: 1, 32, 96>}, {transform_indices = @transform_4, window_bounds = array<i64: 1, 1, 96>}, {transform_indices = @transform_5, window_bounds = array<i64: 1, 1, 96>}, {transform_indices = @transform_6, window_bounds = array<i64: 1, 64, 32>}, {transform_indices = @transform_7, window_bounds = array<i64: 1, 8, 32>}]} {
    %c0_i32 = arith.constant 0 : i32
    %0 = arith.cmpi eq, %arg1, %c0_i32 : i32
    %1 = arith.extui %0 : i1 to i32
    %c0_i32_0 = arith.constant 0 : i32
    %2 = arith.cmpi ne, %1, %c0_i32_0 : i32
    scf.if %2 {
      %cst_116 = arith.constant 0.000000e+00 : f32
      %462 = vector.broadcast %cst_116 : f32 to vector<8x32xf32>
      %c0_117 = arith.constant 0 : index
      %c0_118 = arith.constant 0 : index
      %463 = vector.load %arg11[%c0_117, %c0_118] : memref<8x32xf32, #tpu.memory_space<vmem>>, vector<8x32xf32>
      tpu.vector_store %arg11[%c0_117, %c0_118], %462 {strides = array<i32>} : memref<8x32xf32, #tpu.memory_space<vmem>>, vector<8x32xf32>,
    } else {
    }
    %c1_i32 = arith.constant 1 : i32
    %3 = arith.subi %c1_i32, %arg0 : i32
    %4 = arith.muli %3, %arg1 : i32
    %c0_i32_1 = arith.constant 0 : i32
    %5 = arith.subi %c0_i32_1, %arg1 : i32
    %6 = arith.muli %arg0, %5 : i32
    %7 = arith.addi %4, %6 : i32
    %c8_i32 = arith.constant 8 : i32
    %8 = arith.muli %7, %c8_i32 : i32
    %c0 = arith.constant 0 : index
    %c0_2 = arith.constant 0 : index
    %9 = vector.load %arg3[%c0, %c0_2] : memref<64x16xbf16, #tpu.memory_space<vmem>>, vector<64x16xbf16>
    %c0_3 = arith.constant 0 : index
    %c0_4 = arith.constant 0 : index
    %c0_5 = arith.constant 0 : index
    %10 = vector.load %arg4[%c0_3, %c0_4, %c0_5] : memref<1x16x96xbf16, #tpu.memory_space<vmem>>, vector<1x16x96xbf16>
    %11 = vector.shape_cast %10 : vector<1x16x96xbf16> to vector<16x96xbf16>
    %cst = arith.constant dense<0.000000e+00> : vector<64x96xf32>
    %12 = tpu.matmul %9, %11, %cst {dimension_numbers = #tpu.dot_dimension_numbers<[1], [0], [0], [1], [0, 0, 1, 1], [], []>} : vector<64x16xbf16>, vector<16x96xbf16>, vector<64x96xf32> -> vector<64x96xf32>
    %c0_6 = arith.constant 0 : index
    %c0_7 = arith.constant 0 : index
    %c0_8 = arith.constant 0 : index
    %13 = vector.load %arg6[%c0_6, %c0_7, %c0_8] : memref<1x1x96xf32, #tpu.memory_space<vmem>>, vector<1x1x96xf32>
    %14 = vector.shape_cast %13 : vector<1x1x96xf32> to vector<1x96xf32>
    %15 = vector.broadcast %14 : vector<1x96xf32> to vector<64x96xf32>
    %16 = arith.addf %12, %15 : vector<64x96xf32>
    %c0_9 = arith.constant 0 : index
    %c0_10 = arith.constant 0 : index
    %17 = vector.load %arg10[%c0_9, %c0_10] : memref<64x96xf32, #tpu.memory_space<vmem>>, vector<64x96xf32>
    tpu.vector_store %arg10[%c0_9, %c0_10], %16 {strides = array<i32>} : memref<64x96xf32, #tpu.memory_space<vmem>>, vector<64x96xf32>,
    %c0_11 = arith.constant 0 : index
    %c0_12 = arith.constant 0 : index
    %c0_13 = arith.constant 0 : index
    %18 = vector.load %arg5[%c0_11, %c0_12, %c0_13] : memref<1x32x96xbf16, #tpu.memory_space<vmem>>, vector<1x32x96xbf16>
    %19 = vector.shape_cast %18 : vector<1x32x96xbf16> to vector<32x96xbf16>
    %c0_14 = arith.constant 0 : index
    %c0_15 = arith.constant 0 : index
    %c0_16 = arith.constant 0 : index
    %20 = vector.load %arg7[%c0_14, %c0_15, %c0_16] : memref<1x1x96xf32, #tpu.memory_space<vmem>>, vector<1x1x96xf32>
    %21 = vector.shape_cast %20 : vector<1x1x96xf32> to vector<1x96xf32>
    %22 = vector.shape_cast %21 : vector<1x96xf32> to vector<1x96xf32>
    %23 = vector.broadcast %22 : vector<1x96xf32> to vector<8x96xf32>
    %c0_17 = arith.constant 0 : index
    %c0_18 = arith.constant 0 : index
    %24 = vector.load %arg2[%c0_17, %c0_18] : memref<8x1xi32, #tpu.memory_space<vmem>>, vector<8x1xi32>
    %c0_19 = arith.constant 0 : index
    %c0_20 = arith.constant 0 : index
    %25 = vector.load %arg11[%c0_19, %c0_20] : memref<8x32xf32, #tpu.memory_space<vmem>>, vector<8x32xf32>
    %c0_i32_21 = arith.constant 0 : i32
    %c1_i32_22 = arith.constant 1 : i32
    %26 = arith.subi %c1_i32_22, %arg0 : i32
    %27 = arith.muli %26, %c0_i32_21 : i32
    %c7_i32 = arith.constant 7 : i32
    %28 = arith.subi %c7_i32, %c0_i32_21 : i32
    %29 = arith.muli %arg0, %28 : i32
    %30 = arith.addi %27, %29 : i32
    %31 = arith.addi %8, %30 : i32
    %c8_i32_23 = arith.constant 8 : i32
    %32 = arith.muli %30, %c8_i32_23 : i32
    %33 = tpu.assume_multiple %32, 8 : i32
    %34 = arith.index_cast %33 : i32 to index
    %c0_24 = arith.constant 0 : index
    %35 = vector.load %arg10[%34, %c0_24] : memref<64x96xf32, #tpu.memory_space<vmem>>, vector<8x96xf32>
    %36 = arith.truncf %25 : vector<8x32xf32> to vector<8x32xbf16>
    %cst_25 = arith.constant dense<0.000000e+00> : vector<8x96xf32>
    %37 = tpu.matmul %36, %19, %cst_25 {dimension_numbers = #tpu.dot_dimension_numbers<[1], [0], [0], [1], [0, 0, 1, 1], [], []>} : vector<8x32xbf16>, vector<32x96xbf16>, vector<8x96xf32> -> vector<8x96xf32>
    %38 = arith.addf %37, %23 : vector<8x96xf32>
    %39 = vector.extract_strided_slice %35 {offsets = [0, 0], sizes = [8, 32], strides = [1, 1]} : vector<8x96xf32> to vector<8x32xf32>
    %40 = vector.extract_strided_slice %38 {offsets = [0, 0], sizes = [8, 32], strides = [1, 1]} : vector<8x96xf32> to vector<8x32xf32>
    %41 = arith.addf %39, %40 : vector<8x32xf32>
    %42 = arith.negf %41 : vector<8x32xf32>
    %43 = math.exp %42 : vector<8x32xf32>
    %cst_26 = arith.constant 1.000000e+00 : f32
    %44 = vector.broadcast %cst_26 : f32 to vector<8x32xf32>
    %45 = arith.addf %44, %43 : vector<8x32xf32>
    %46 = arith.divf %44, %45 : vector<8x32xf32>
    %47 = vector.extract_strided_slice %35 {offsets = [0, 32], sizes = [8, 32], strides = [1, 1]} : vector<8x96xf32> to vector<8x32xf32>
    %48 = vector.extract_strided_slice %38 {offsets = [0, 32], sizes = [8, 32], strides = [1, 1]} : vector<8x96xf32> to vector<8x32xf32>
    %49 = arith.addf %47, %48 : vector<8x32xf32>
    %50 = arith.negf %49 : vector<8x32xf32>
    %51 = math.exp %50 : vector<8x32xf32>
    %cst_27 = arith.constant 1.000000e+00 : f32
    %52 = vector.broadcast %cst_27 : f32 to vector<8x32xf32>
    %53 = arith.addf %52, %51 : vector<8x32xf32>
    %54 = arith.divf %52, %53 : vector<8x32xf32>
    %55 = vector.extract_strided_slice %35 {offsets = [0, 64], sizes = [8, 32], strides = [1, 1]} : vector<8x96xf32> to vector<8x32xf32>
    %56 = vector.extract_strided_slice %38 {offsets = [0, 64], sizes = [8, 32], strides = [1, 1]} : vector<8x96xf32> to vector<8x32xf32>
    %57 = arith.mulf %46, %56 : vector<8x32xf32>
    %58 = arith.addf %55, %57 : vector<8x32xf32>
    %59 = math.tanh %58 : vector<8x32xf32>
    %cst_28 = arith.constant 1.000000e+00 : f32
    %60 = vector.broadcast %cst_28 : f32 to vector<8x32xf32>
    %61 = arith.subf %60, %54 : vector<8x32xf32>
    %62 = arith.mulf %61, %59 : vector<8x32xf32>
    %63 = arith.mulf %54, %25 : vector<8x32xf32>
    %64 = arith.addf %62, %63 : vector<8x32xf32>
    %65 = vector.broadcast %31 : i32 to vector<8x1xi32>
    %66 = arith.cmpi slt, %65, %24 : vector<8x1xi32>
    %67 = arith.extui %66 : vector<8x1xi1> to vector<8x1xi32>
    %68 = arith.sitofp %67 : vector<8x1xi32> to vector<8x1xf32>
    %69 = vector.broadcast %68 : vector<8x1xf32> to vector<8x32xf32>
    %70 = arith.mulf %69, %64 : vector<8x32xf32>
    %c0_29 = arith.constant 0 : index
    %71 = arith.index_cast %33 : i32 to index
    %c0_30 = arith.constant 0 : index
    %72 = vector.load %arg8[%c0_29, %71, %c0_30] : memref<1x64x32xf32, #tpu.memory_space<vmem>>, vector<1x8x32xf32>
    %73 = vector.shape_cast %72 : vector<1x8x32xf32> to vector<8x32xf32>
    %74 = vector.shape_cast %70 : vector<8x32xf32> to vector<1x8x32xf32>
    tpu.vector_store %arg8[%c0_29, %71, %c0_30], %74 {strides = array<i32>} : memref<1x64x32xf32, #tpu.memory_space<vmem>>, vector<1x8x32xf32>,
    %cst_31 = arith.constant 1.000000e+00 : f32
    %75 = vector.broadcast %cst_31 : f32 to vector<8x1xf32>
    %76 = arith.subf %75, %68 : vector<8x1xf32>
    %77 = vector.broadcast %76 : vector<8x1xf32> to vector<8x32xf32>
    %78 = arith.mulf %77, %25 : vector<8x32xf32>
    %79 = arith.addf %70, %78 : vector<8x32xf32>
    %c1_i32_32 = arith.constant 1 : i32
    %c1_i32_33 = arith.constant 1 : i32
    %80 = arith.subi %c1_i32_33, %arg0 : i32
    %81 = arith.muli %80, %c1_i32_32 : i32
    %c7_i32_34 = arith.constant 7 : i32
    %82 = arith.subi %c7_i32_34, %c1_i32_32 : i32
    %83 = arith.muli %arg0, %82 : i32
    %84 = arith.addi %81, %83 : i32
    %85 = arith.addi %8, %84 : i32
    %c8_i32_35 = arith.constant 8 : i32
    %86 = arith.muli %84, %c8_i32_35 : i32
    %87 = tpu.assume_multiple %86, 8 : i32
    %88 = arith.index_cast %87 : i32 to index
    %c0_36 = arith.constant 0 : index
    %89 = vector.load %arg10[%88, %c0_36] : memref<64x96xf32, #tpu.memory_space<vmem>>, vector<8x96xf32>
    %90 = arith.truncf %79 : vector<8x32xf32> to vector<8x32xbf16>
    %cst_37 = arith.constant dense<0.000000e+00> : vector<8x96xf32>
    %91 = tpu.matmul %90, %19, %cst_37 {dimension_numbers = #tpu.dot_dimension_numbers<[1], [0], [0], [1], [0, 0, 1, 1], [], []>} : vector<8x32xbf16>, vector<32x96xbf16>, vector<8x96xf32> -> vector<8x96xf32>
    %92 = arith.addf %91, %23 : vector<8x96xf32>
    %93 = vector.extract_strided_slice %89 {offsets = [0, 0], sizes = [8, 32], strides = [1, 1]} : vector<8x96xf32> to vector<8x32xf32>
    %94 = vector.extract_strided_slice %92 {offsets = [0, 0], sizes = [8, 32], strides = [1, 1]} : vector<8x96xf32> to vector<8x32xf32>
    %95 = arith.addf %93, %94 : vector<8x32xf32>
    %96 = arith.negf %95 : vector<8x32xf32>
    %97 = math.exp %96 : vector<8x32xf32>
    %cst_38 = arith.constant 1.000000e+00 : f32
    %98 = vector.broadcast %cst_38 : f32 to vector<8x32xf32>
    %99 = arith.addf %98, %97 : vector<8x32xf32>
    %100 = arith.divf %98, %99 : vector<8x32xf32>
    %101 = vector.extract_strided_slice %89 {offsets = [0, 32], sizes = [8, 32], strides = [1, 1]} : vector<8x96xf32> to vector<8x32xf32>
    %102 = vector.extract_strided_slice %92 {offsets = [0, 32], sizes = [8, 32], strides = [1, 1]} : vector<8x96xf32> to vector<8x32xf32>
    %103 = arith.addf %101, %102 : vector<8x32xf32>
    %104 = arith.negf %103 : vector<8x32xf32>
    %105 = math.exp %104 : vector<8x32xf32>
    %cst_39 = arith.constant 1.000000e+00 : f32
    %106 = vector.broadcast %cst_39 : f32 to vector<8x32xf32>
    %107 = arith.addf %106, %105 : vector<8x32xf32>
    %108 = arith.divf %106, %107 : vector<8x32xf32>
    %109 = vector.extract_strided_slice %89 {offsets = [0, 64], sizes = [8, 32], strides = [1, 1]} : vector<8x96xf32> to vector<8x32xf32>
    %110 = vector.extract_strided_slice %92 {offsets = [0, 64], sizes = [8, 32], strides = [1, 1]} : vector<8x96xf32> to vector<8x32xf32>
    %111 = arith.mulf %100, %110 : vector<8x32xf32>
    %112 = arith.addf %109, %111 : vector<8x32xf32>
    %113 = math.tanh %112 : vector<8x32xf32>
    %cst_40 = arith.constant 1.000000e+00 : f32
    %114 = vector.broadcast %cst_40 : f32 to vector<8x32xf32>
    %115 = arith.subf %114, %108 : vector<8x32xf32>
    %116 = arith.mulf %115, %113 : vector<8x32xf32>
    %117 = arith.mulf %108, %79 : vector<8x32xf32>
    %118 = arith.addf %116, %117 : vector<8x32xf32>
    %119 = vector.broadcast %85 : i32 to vector<8x1xi32>
    %120 = arith.cmpi slt, %119, %24 : vector<8x1xi32>
    %121 = arith.extui %120 : vector<8x1xi1> to vector<8x1xi32>
    %122 = arith.sitofp %121 : vector<8x1xi32> to vector<8x1xf32>
    %123 = vector.broadcast %122 : vector<8x1xf32> to vector<8x32xf32>
    %124 = arith.mulf %123, %118 : vector<8x32xf32>
    %c0_41 = arith.constant 0 : index
    %125 = arith.index_cast %87 : i32 to index
    %c0_42 = arith.constant 0 : index
    %126 = vector.load %arg8[%c0_41, %125, %c0_42] : memref<1x64x32xf32, #tpu.memory_space<vmem>>, vector<1x8x32xf32>
    %127 = vector.shape_cast %126 : vector<1x8x32xf32> to vector<8x32xf32>
    %128 = vector.shape_cast %124 : vector<8x32xf32> to vector<1x8x32xf32>
    tpu.vector_store %arg8[%c0_41, %125, %c0_42], %128 {strides = array<i32>} : memref<1x64x32xf32, #tpu.memory_space<vmem>>, vector<1x8x32xf32>,
    %cst_43 = arith.constant 1.000000e+00 : f32
    %129 = vector.broadcast %cst_43 : f32 to vector<8x1xf32>
    %130 = arith.subf %129, %122 : vector<8x1xf32>
    %131 = vector.broadcast %130 : vector<8x1xf32> to vector<8x32xf32>
    %132 = arith.mulf %131, %79 : vector<8x32xf32>
    %133 = arith.addf %124, %132 : vector<8x32xf32>
    %c2_i32 = arith.constant 2 : i32
    %c1_i32_44 = arith.constant 1 : i32
    %134 = arith.subi %c1_i32_44, %arg0 : i32
    %135 = arith.muli %134, %c2_i32 : i32
    %c7_i32_45 = arith.constant 7 : i32
    %136 = arith.subi %c7_i32_45, %c2_i32 : i32
    %137 = arith.muli %arg0, %136 : i32
    %138 = arith.addi %135, %137 : i32
    %139 = arith.addi %8, %138 : i32
    %c8_i32_46 = arith.constant 8 : i32
    %140 = arith.muli %138, %c8_i32_46 : i32
    %141 = tpu.assume_multiple %140, 8 : i32
    %142 = arith.index_cast %141 : i32 to index
    %c0_47 = arith.constant 0 : index
    %143 = vector.load %arg10[%142, %c0_47] : memref<64x96xf32, #tpu.memory_space<vmem>>, vector<8x96xf32>
    %144 = arith.truncf %133 : vector<8x32xf32> to vector<8x32xbf16>
    %cst_48 = arith.constant dense<0.000000e+00> : vector<8x96xf32>
    %145 = tpu.matmul %144, %19, %cst_48 {dimension_numbers = #tpu.dot_dimension_numbers<[1], [0], [0], [1], [0, 0, 1, 1], [], []>} : vector<8x32xbf16>, vector<32x96xbf16>, vector<8x96xf32> -> vector<8x96xf32>
    %146 = arith.addf %145, %23 : vector<8x96xf32>
    %147 = vector.extract_strided_slice %143 {offsets = [0, 0], sizes = [8, 32], strides = [1, 1]} : vector<8x96xf32> to vector<8x32xf32>
    %148 = vector.extract_strided_slice %146 {offsets = [0, 0], sizes = [8, 32], strides = [1, 1]} : vector<8x96xf32> to vector<8x32xf32>
    %149 = arith.addf %147, %148 : vector<8x32xf32>
    %150 = arith.negf %149 : vector<8x32xf32>
    %151 = math.exp %150 : vector<8x32xf32>
    %cst_49 = arith.constant 1.000000e+00 : f32
    %152 = vector.broadcast %cst_49 : f32 to vector<8x32xf32>
    %153 = arith.addf %152, %151 : vector<8x32xf32>
    %154 = arith.divf %152, %153 : vector<8x32xf32>
    %155 = vector.extract_strided_slice %143 {offsets = [0, 32], sizes = [8, 32], strides = [1, 1]} : vector<8x96xf32> to vector<8x32xf32>
    %156 = vector.extract_strided_slice %146 {offsets = [0, 32], sizes = [8, 32], strides = [1, 1]} : vector<8x96xf32> to vector<8x32xf32>
    %157 = arith.addf %155, %156 : vector<8x32xf32>
    %158 = arith.negf %157 : vector<8x32xf32>
    %159 = math.exp %158 : vector<8x32xf32>
    %cst_50 = arith.constant 1.000000e+00 : f32
    %160 = vector.broadcast %cst_50 : f32 to vector<8x32xf32>
    %161 = arith.addf %160, %159 : vector<8x32xf32>
    %162 = arith.divf %160, %161 : vector<8x32xf32>
    %163 = vector.extract_strided_slice %143 {offsets = [0, 64], sizes = [8, 32], strides = [1, 1]} : vector<8x96xf32> to vector<8x32xf32>
    %164 = vector.extract_strided_slice %146 {offsets = [0, 64], sizes = [8, 32], strides = [1, 1]} : vector<8x96xf32> to vector<8x32xf32>
    %165 = arith.mulf %154, %164 : vector<8x32xf32>
    %166 = arith.addf %163, %165 : vector<8x32xf32>
    %167 = math.tanh %166 : vector<8x32xf32>
    %cst_51 = arith.constant 1.000000e+00 : f32
    %168 = vector.broadcast %cst_51 : f32 to vector<8x32xf32>
    %169 = arith.subf %168, %162 : vector<8x32xf32>
    %170 = arith.mulf %169, %167 : vector<8x32xf32>
    %171 = arith.mulf %162, %133 : vector<8x32xf32>
    %172 = arith.addf %170, %171 : vector<8x32xf32>
    %173 = vector.broadcast %139 : i32 to vector<8x1xi32>
    %174 = arith.cmpi slt, %173, %24 : vector<8x1xi32>
    %175 = arith.extui %174 : vector<8x1xi1> to vector<8x1xi32>
    %176 = arith.sitofp %175 : vector<8x1xi32> to vector<8x1xf32>
    %177 = vector.broadcast %176 : vector<8x1xf32> to vector<8x32xf32>
    %178 = arith.mulf %177, %172 : vector<8x32xf32>
    %c0_52 = arith.constant 0 : index
    %179 = arith.index_cast %141 : i32 to index
    %c0_53 = arith.constant 0 : index
    %180 = vector.load %arg8[%c0_52, %179, %c0_53] : memref<1x64x32xf32, #tpu.memory_space<vmem>>, vector<1x8x32xf32>
    %181 = vector.shape_cast %180 : vector<1x8x32xf32> to vector<8x32xf32>
    %182 = vector.shape_cast %178 : vector<8x32xf32> to vector<1x8x32xf32>
    tpu.vector_store %arg8[%c0_52, %179, %c0_53], %182 {strides = array<i32>} : memref<1x64x32xf32, #tpu.memory_space<vmem>>, vector<1x8x32xf32>,
    %cst_54 = arith.constant 1.000000e+00 : f32
    %183 = vector.broadcast %cst_54 : f32 to vector<8x1xf32>
    %184 = arith.subf %183, %176 : vector<8x1xf32>
    %185 = vector.broadcast %184 : vector<8x1xf32> to vector<8x32xf32>
    %186 = arith.mulf %185, %133 : vector<8x32xf32>
    %187 = arith.addf %178, %186 : vector<8x32xf32>
    %c3_i32 = arith.constant 3 : i32
    %c1_i32_55 = arith.constant 1 : i32
    %188 = arith.subi %c1_i32_55, %arg0 : i32
    %189 = arith.muli %188, %c3_i32 : i32
    %c7_i32_56 = arith.constant 7 : i32
    %190 = arith.subi %c7_i32_56, %c3_i32 : i32
    %191 = arith.muli %arg0, %190 : i32
    %192 = arith.addi %189, %191 : i32
    %193 = arith.addi %8, %192 : i32
    %c8_i32_57 = arith.constant 8 : i32
    %194 = arith.muli %192, %c8_i32_57 : i32
    %195 = tpu.assume_multiple %194, 8 : i32
    %196 = arith.index_cast %195 : i32 to index
    %c0_58 = arith.constant 0 : index
    %197 = vector.load %arg10[%196, %c0_58] : memref<64x96xf32, #tpu.memory_space<vmem>>, vector<8x96xf32>
    %198 = arith.truncf %187 : vector<8x32xf32> to vector<8x32xbf16>
    %cst_59 = arith.constant dense<0.000000e+00> : vector<8x96xf32>
    %199 = tpu.matmul %198, %19, %cst_59 {dimension_numbers = #tpu.dot_dimension_numbers<[1], [0], [0], [1], [0, 0, 1, 1], [], []>} : vector<8x32xbf16>, vector<32x96xbf16>, vector<8x96xf32> -> vector<8x96xf32>
    %200 = arith.addf %199, %23 : vector<8x96xf32>
    %201 = vector.extract_strided_slice %197 {offsets = [0, 0], sizes = [8, 32], strides = [1, 1]} : vector<8x96xf32> to vector<8x32xf32>
    %202 = vector.extract_strided_slice %200 {offsets = [0, 0], sizes = [8, 32], strides = [1, 1]} : vector<8x96xf32> to vector<8x32xf32>
    %203 = arith.addf %201, %202 : vector<8x32xf32>
    %204 = arith.negf %203 : vector<8x32xf32>
    %205 = math.exp %204 : vector<8x32xf32>
    %cst_60 = arith.constant 1.000000e+00 : f32
    %206 = vector.broadcast %cst_60 : f32 to vector<8x32xf32>
    %207 = arith.addf %206, %205 : vector<8x32xf32>
    %208 = arith.divf %206, %207 : vector<8x32xf32>
    %209 = vector.extract_strided_slice %197 {offsets = [0, 32], sizes = [8, 32], strides = [1, 1]} : vector<8x96xf32> to vector<8x32xf32>
    %210 = vector.extract_strided_slice %200 {offsets = [0, 32], sizes = [8, 32], strides = [1, 1]} : vector<8x96xf32> to vector<8x32xf32>
    %211 = arith.addf %209, %210 : vector<8x32xf32>
    %212 = arith.negf %211 : vector<8x32xf32>
    %213 = math.exp %212 : vector<8x32xf32>
    %cst_61 = arith.constant 1.000000e+00 : f32
    %214 = vector.broadcast %cst_61 : f32 to vector<8x32xf32>
    %215 = arith.addf %214, %213 : vector<8x32xf32>
    %216 = arith.divf %214, %215 : vector<8x32xf32>
    %217 = vector.extract_strided_slice %197 {offsets = [0, 64], sizes = [8, 32], strides = [1, 1]} : vector<8x96xf32> to vector<8x32xf32>
    %218 = vector.extract_strided_slice %200 {offsets = [0, 64], sizes = [8, 32], strides = [1, 1]} : vector<8x96xf32> to vector<8x32xf32>
    %219 = arith.mulf %208, %218 : vector<8x32xf32>
    %220 = arith.addf %217, %219 : vector<8x32xf32>
    %221 = math.tanh %220 : vector<8x32xf32>
    %cst_62 = arith.constant 1.000000e+00 : f32
    %222 = vector.broadcast %cst_62 : f32 to vector<8x32xf32>
    %223 = arith.subf %222, %216 : vector<8x32xf32>
    %224 = arith.mulf %223, %221 : vector<8x32xf32>
    %225 = arith.mulf %216, %187 : vector<8x32xf32>
    %226 = arith.addf %224, %225 : vector<8x32xf32>
    %227 = vector.broadcast %193 : i32 to vector<8x1xi32>
    %228 = arith.cmpi slt, %227, %24 : vector<8x1xi32>
    %229 = arith.extui %228 : vector<8x1xi1> to vector<8x1xi32>
    %230 = arith.sitofp %229 : vector<8x1xi32> to vector<8x1xf32>
    %231 = vector.broadcast %230 : vector<8x1xf32> to vector<8x32xf32>
    %232 = arith.mulf %231, %226 : vector<8x32xf32>
    %c0_63 = arith.constant 0 : index
    %233 = arith.index_cast %195 : i32 to index
    %c0_64 = arith.constant 0 : index
    %234 = vector.load %arg8[%c0_63, %233, %c0_64] : memref<1x64x32xf32, #tpu.memory_space<vmem>>, vector<1x8x32xf32>
    %235 = vector.shape_cast %234 : vector<1x8x32xf32> to vector<8x32xf32>
    %236 = vector.shape_cast %232 : vector<8x32xf32> to vector<1x8x32xf32>
    tpu.vector_store %arg8[%c0_63, %233, %c0_64], %236 {strides = array<i32>} : memref<1x64x32xf32, #tpu.memory_space<vmem>>, vector<1x8x32xf32>,
    %cst_65 = arith.constant 1.000000e+00 : f32
    %237 = vector.broadcast %cst_65 : f32 to vector<8x1xf32>
    %238 = arith.subf %237, %230 : vector<8x1xf32>
    %239 = vector.broadcast %238 : vector<8x1xf32> to vector<8x32xf32>
    %240 = arith.mulf %239, %187 : vector<8x32xf32>
    %241 = arith.addf %232, %240 : vector<8x32xf32>
    %c4_i32 = arith.constant 4 : i32
    %c1_i32_66 = arith.constant 1 : i32
    %242 = arith.subi %c1_i32_66, %arg0 : i32
    %243 = arith.muli %242, %c4_i32 : i32
    %c7_i32_67 = arith.constant 7 : i32
    %244 = arith.subi %c7_i32_67, %c4_i32 : i32
    %245 = arith.muli %arg0, %244 : i32
    %246 = arith.addi %243, %245 : i32
    %247 = arith.addi %8, %246 : i32
    %c8_i32_68 = arith.constant 8 : i32
    %248 = arith.muli %246, %c8_i32_68 : i32
    %249 = tpu.assume_multiple %248, 8 : i32
    %250 = arith.index_cast %249 : i32 to index
    %c0_69 = arith.constant 0 : index
    %251 = vector.load %arg10[%250, %c0_69] : memref<64x96xf32, #tpu.memory_space<vmem>>, vector<8x96xf32>
    %252 = arith.truncf %241 : vector<8x32xf32> to vector<8x32xbf16>
    %cst_70 = arith.constant dense<0.000000e+00> : vector<8x96xf32>
    %253 = tpu.matmul %252, %19, %cst_70 {dimension_numbers = #tpu.dot_dimension_numbers<[1], [0], [0], [1], [0, 0, 1, 1], [], []>} : vector<8x32xbf16>, vector<32x96xbf16>, vector<8x96xf32> -> vector<8x96xf32>
    %254 = arith.addf %253, %23 : vector<8x96xf32>
    %255 = vector.extract_strided_slice %251 {offsets = [0, 0], sizes = [8, 32], strides = [1, 1]} : vector<8x96xf32> to vector<8x32xf32>
    %256 = vector.extract_strided_slice %254 {offsets = [0, 0], sizes = [8, 32], strides = [1, 1]} : vector<8x96xf32> to vector<8x32xf32>
    %257 = arith.addf %255, %256 : vector<8x32xf32>
    %258 = arith.negf %257 : vector<8x32xf32>
    %259 = math.exp %258 : vector<8x32xf32>
    %cst_71 = arith.constant 1.000000e+00 : f32
    %260 = vector.broadcast %cst_71 : f32 to vector<8x32xf32>
    %261 = arith.addf %260, %259 : vector<8x32xf32>
    %262 = arith.divf %260, %261 : vector<8x32xf32>
    %263 = vector.extract_strided_slice %251 {offsets = [0, 32], sizes = [8, 32], strides = [1, 1]} : vector<8x96xf32> to vector<8x32xf32>
    %264 = vector.extract_strided_slice %254 {offsets = [0, 32], sizes = [8, 32], strides = [1, 1]} : vector<8x96xf32> to vector<8x32xf32>
    %265 = arith.addf %263, %264 : vector<8x32xf32>
    %266 = arith.negf %265 : vector<8x32xf32>
    %267 = math.exp %266 : vector<8x32xf32>
    %cst_72 = arith.constant 1.000000e+00 : f32
    %268 = vector.broadcast %cst_72 : f32 to vector<8x32xf32>
    %269 = arith.addf %268, %267 : vector<8x32xf32>
    %270 = arith.divf %268, %269 : vector<8x32xf32>
    %271 = vector.extract_strided_slice %251 {offsets = [0, 64], sizes = [8, 32], strides = [1, 1]} : vector<8x96xf32> to vector<8x32xf32>
    %272 = vector.extract_strided_slice %254 {offsets = [0, 64], sizes = [8, 32], strides = [1, 1]} : vector<8x96xf32> to vector<8x32xf32>
    %273 = arith.mulf %262, %272 : vector<8x32xf32>
    %274 = arith.addf %271, %273 : vector<8x32xf32>
    %275 = math.tanh %274 : vector<8x32xf32>
    %cst_73 = arith.constant 1.000000e+00 : f32
    %276 = vector.broadcast %cst_73 : f32 to vector<8x32xf32>
    %277 = arith.subf %276, %270 : vector<8x32xf32>
    %278 = arith.mulf %277, %275 : vector<8x32xf32>
    %279 = arith.mulf %270, %241 : vector<8x32xf32>
    %280 = arith.addf %278, %279 : vector<8x32xf32>
    %281 = vector.broadcast %247 : i32 to vector<8x1xi32>
    %282 = arith.cmpi slt, %281, %24 : vector<8x1xi32>
    %283 = arith.extui %282 : vector<8x1xi1> to vector<8x1xi32>
    %284 = arith.sitofp %283 : vector<8x1xi32> to vector<8x1xf32>
    %285 = vector.broadcast %284 : vector<8x1xf32> to vector<8x32xf32>
    %286 = arith.mulf %285, %280 : vector<8x32xf32>
    %c0_74 = arith.constant 0 : index
    %287 = arith.index_cast %249 : i32 to index
    %c0_75 = arith.constant 0 : index
    %288 = vector.load %arg8[%c0_74, %287, %c0_75] : memref<1x64x32xf32, #tpu.memory_space<vmem>>, vector<1x8x32xf32>
    %289 = vector.shape_cast %288 : vector<1x8x32xf32> to vector<8x32xf32>
    %290 = vector.shape_cast %286 : vector<8x32xf32> to vector<1x8x32xf32>
    tpu.vector_store %arg8[%c0_74, %287, %c0_75], %290 {strides = array<i32>} : memref<1x64x32xf32, #tpu.memory_space<vmem>>, vector<1x8x32xf32>,
    %cst_76 = arith.constant 1.000000e+00 : f32
    %291 = vector.broadcast %cst_76 : f32 to vector<8x1xf32>
    %292 = arith.subf %291, %284 : vector<8x1xf32>
    %293 = vector.broadcast %292 : vector<8x1xf32> to vector<8x32xf32>
    %294 = arith.mulf %293, %241 : vector<8x32xf32>
    %295 = arith.addf %286, %294 : vector<8x32xf32>
    %c5_i32 = arith.constant 5 : i32
    %c1_i32_77 = arith.constant 1 : i32
    %296 = arith.subi %c1_i32_77, %arg0 : i32
    %297 = arith.muli %296, %c5_i32 : i32
    %c7_i32_78 = arith.constant 7 : i32
    %298 = arith.subi %c7_i32_78, %c5_i32 : i32
    %299 = arith.muli %arg0, %298 : i32
    %300 = arith.addi %297, %299 : i32
    %301 = arith.addi %8, %300 : i32
    %c8_i32_79 = arith.constant 8 : i32
    %302 = arith.muli %300, %c8_i32_79 : i32
    %303 = tpu.assume_multiple %302, 8 : i32
    %304 = arith.index_cast %303 : i32 to index
    %c0_80 = arith.constant 0 : index
    %305 = vector.load %arg10[%304, %c0_80] : memref<64x96xf32, #tpu.memory_space<vmem>>, vector<8x96xf32>
    %306 = arith.truncf %295 : vector<8x32xf32> to vector<8x32xbf16>
    %cst_81 = arith.constant dense<0.000000e+00> : vector<8x96xf32>
    %307 = tpu.matmul %306, %19, %cst_81 {dimension_numbers = #tpu.dot_dimension_numbers<[1], [0], [0], [1], [0, 0, 1, 1], [], []>} : vector<8x32xbf16>, vector<32x96xbf16>, vector<8x96xf32> -> vector<8x96xf32>
    %308 = arith.addf %307, %23 : vector<8x96xf32>
    %309 = vector.extract_strided_slice %305 {offsets = [0, 0], sizes = [8, 32], strides = [1, 1]} : vector<8x96xf32> to vector<8x32xf32>
    %310 = vector.extract_strided_slice %308 {offsets = [0, 0], sizes = [8, 32], strides = [1, 1]} : vector<8x96xf32> to vector<8x32xf32>
    %311 = arith.addf %309, %310 : vector<8x32xf32>
    %312 = arith.negf %311 : vector<8x32xf32>
    %313 = math.exp %312 : vector<8x32xf32>
    %cst_82 = arith.constant 1.000000e+00 : f32
    %314 = vector.broadcast %cst_82 : f32 to vector<8x32xf32>
    %315 = arith.addf %314, %313 : vector<8x32xf32>
    %316 = arith.divf %314, %315 : vector<8x32xf32>
    %317 = vector.extract_strided_slice %305 {offsets = [0, 32], sizes = [8, 32], strides = [1, 1]} : vector<8x96xf32> to vector<8x32xf32>
    %318 = vector.extract_strided_slice %308 {offsets = [0, 32], sizes = [8, 32], strides = [1, 1]} : vector<8x96xf32> to vector<8x32xf32>
    %319 = arith.addf %317, %318 : vector<8x32xf32>
    %320 = arith.negf %319 : vector<8x32xf32>
    %321 = math.exp %320 : vector<8x32xf32>
    %cst_83 = arith.constant 1.000000e+00 : f32
    %322 = vector.broadcast %cst_83 : f32 to vector<8x32xf32>
    %323 = arith.addf %322, %321 : vector<8x32xf32>
    %324 = arith.divf %322, %323 : vector<8x32xf32>
    %325 = vector.extract_strided_slice %305 {offsets = [0, 64], sizes = [8, 32], strides = [1, 1]} : vector<8x96xf32> to vector<8x32xf32>
    %326 = vector.extract_strided_slice %308 {offsets = [0, 64], sizes = [8, 32], strides = [1, 1]} : vector<8x96xf32> to vector<8x32xf32>
    %327 = arith.mulf %316, %326 : vector<8x32xf32>
    %328 = arith.addf %325, %327 : vector<8x32xf32>
    %329 = math.tanh %328 : vector<8x32xf32>
    %cst_84 = arith.constant 1.000000e+00 : f32
    %330 = vector.broadcast %cst_84 : f32 to vector<8x32xf32>
    %331 = arith.subf %330, %324 : vector<8x32xf32>
    %332 = arith.mulf %331, %329 : vector<8x32xf32>
    %333 = arith.mulf %324, %295 : vector<8x32xf32>
    %334 = arith.addf %332, %333 : vector<8x32xf32>
    %335 = vector.broadcast %301 : i32 to vector<8x1xi32>
    %336 = arith.cmpi slt, %335, %24 : vector<8x1xi32>
    %337 = arith.extui %336 : vector<8x1xi1> to vector<8x1xi32>
    %338 = arith.sitofp %337 : vector<8x1xi32> to vector<8x1xf32>
    %339 = vector.broadcast %338 : vector<8x1xf32> to vector<8x32xf32>
    %340 = arith.mulf %339, %334 : vector<8x32xf32>
    %c0_85 = arith.constant 0 : index
    %341 = arith.index_cast %303 : i32 to index
    %c0_86 = arith.constant 0 : index
    %342 = vector.load %arg8[%c0_85, %341, %c0_86] : memref<1x64x32xf32, #tpu.memory_space<vmem>>, vector<1x8x32xf32>
    %343 = vector.shape_cast %342 : vector<1x8x32xf32> to vector<8x32xf32>
    %344 = vector.shape_cast %340 : vector<8x32xf32> to vector<1x8x32xf32>
    tpu.vector_store %arg8[%c0_85, %341, %c0_86], %344 {strides = array<i32>} : memref<1x64x32xf32, #tpu.memory_space<vmem>>, vector<1x8x32xf32>,
    %cst_87 = arith.constant 1.000000e+00 : f32
    %345 = vector.broadcast %cst_87 : f32 to vector<8x1xf32>
    %346 = arith.subf %345, %338 : vector<8x1xf32>
    %347 = vector.broadcast %346 : vector<8x1xf32> to vector<8x32xf32>
    %348 = arith.mulf %347, %295 : vector<8x32xf32>
    %349 = arith.addf %340, %348 : vector<8x32xf32>
    %c6_i32 = arith.constant 6 : i32
    %c1_i32_88 = arith.constant 1 : i32
    %350 = arith.subi %c1_i32_88, %arg0 : i32
    %351 = arith.muli %350, %c6_i32 : i32
    %c7_i32_89 = arith.constant 7 : i32
    %352 = arith.subi %c7_i32_89, %c6_i32 : i32
    %353 = arith.muli %arg0, %352 : i32
    %354 = arith.addi %351, %353 : i32
    %355 = arith.addi %8, %354 : i32
    %c8_i32_90 = arith.constant 8 : i32
    %356 = arith.muli %354, %c8_i32_90 : i32
    %357 = tpu.assume_multiple %356, 8 : i32
    %358 = arith.index_cast %357 : i32 to index
    %c0_91 = arith.constant 0 : index
    %359 = vector.load %arg10[%358, %c0_91] : memref<64x96xf32, #tpu.memory_space<vmem>>, vector<8x96xf32>
    %360 = arith.truncf %349 : vector<8x32xf32> to vector<8x32xbf16>
    %cst_92 = arith.constant dense<0.000000e+00> : vector<8x96xf32>
    %361 = tpu.matmul %360, %19, %cst_92 {dimension_numbers = #tpu.dot_dimension_numbers<[1], [0], [0], [1], [0, 0, 1, 1], [], []>} : vector<8x32xbf16>, vector<32x96xbf16>, vector<8x96xf32> -> vector<8x96xf32>
    %362 = arith.addf %361, %23 : vector<8x96xf32>
    %363 = vector.extract_strided_slice %359 {offsets = [0, 0], sizes = [8, 32], strides = [1, 1]} : vector<8x96xf32> to vector<8x32xf32>
    %364 = vector.extract_strided_slice %362 {offsets = [0, 0], sizes = [8, 32], strides = [1, 1]} : vector<8x96xf32> to vector<8x32xf32>
    %365 = arith.addf %363, %364 : vector<8x32xf32>
    %366 = arith.negf %365 : vector<8x32xf32>
    %367 = math.exp %366 : vector<8x32xf32>
    %cst_93 = arith.constant 1.000000e+00 : f32
    %368 = vector.broadcast %cst_93 : f32 to vector<8x32xf32>
    %369 = arith.addf %368, %367 : vector<8x32xf32>
    %370 = arith.divf %368, %369 : vector<8x32xf32>
    %371 = vector.extract_strided_slice %359 {offsets = [0, 32], sizes = [8, 32], strides = [1, 1]} : vector<8x96xf32> to vector<8x32xf32>
    %372 = vector.extract_strided_slice %362 {offsets = [0, 32], sizes = [8, 32], strides = [1, 1]} : vector<8x96xf32> to vector<8x32xf32>
    %373 = arith.addf %371, %372 : vector<8x32xf32>
    %374 = arith.negf %373 : vector<8x32xf32>
    %375 = math.exp %374 : vector<8x32xf32>
    %cst_94 = arith.constant 1.000000e+00 : f32
    %376 = vector.broadcast %cst_94 : f32 to vector<8x32xf32>
    %377 = arith.addf %376, %375 : vector<8x32xf32>
    %378 = arith.divf %376, %377 : vector<8x32xf32>
    %379 = vector.extract_strided_slice %359 {offsets = [0, 64], sizes = [8, 32], strides = [1, 1]} : vector<8x96xf32> to vector<8x32xf32>
    %380 = vector.extract_strided_slice %362 {offsets = [0, 64], sizes = [8, 32], strides = [1, 1]} : vector<8x96xf32> to vector<8x32xf32>
    %381 = arith.mulf %370, %380 : vector<8x32xf32>
    %382 = arith.addf %379, %381 : vector<8x32xf32>
    %383 = math.tanh %382 : vector<8x32xf32>
    %cst_95 = arith.constant 1.000000e+00 : f32
    %384 = vector.broadcast %cst_95 : f32 to vector<8x32xf32>
    %385 = arith.subf %384, %378 : vector<8x32xf32>
    %386 = arith.mulf %385, %383 : vector<8x32xf32>
    %387 = arith.mulf %378, %349 : vector<8x32xf32>
    %388 = arith.addf %386, %387 : vector<8x32xf32>
    %389 = vector.broadcast %355 : i32 to vector<8x1xi32>
    %390 = arith.cmpi slt, %389, %24 : vector<8x1xi32>
    %391 = arith.extui %390 : vector<8x1xi1> to vector<8x1xi32>
    %392 = arith.sitofp %391 : vector<8x1xi32> to vector<8x1xf32>
    %393 = vector.broadcast %392 : vector<8x1xf32> to vector<8x32xf32>
    %394 = arith.mulf %393, %388 : vector<8x32xf32>
    %c0_96 = arith.constant 0 : index
    %395 = arith.index_cast %357 : i32 to index
    %c0_97 = arith.constant 0 : index
    %396 = vector.load %arg8[%c0_96, %395, %c0_97] : memref<1x64x32xf32, #tpu.memory_space<vmem>>, vector<1x8x32xf32>
    %397 = vector.shape_cast %396 : vector<1x8x32xf32> to vector<8x32xf32>
    %398 = vector.shape_cast %394 : vector<8x32xf32> to vector<1x8x32xf32>
    tpu.vector_store %arg8[%c0_96, %395, %c0_97], %398 {strides = array<i32>} : memref<1x64x32xf32, #tpu.memory_space<vmem>>, vector<1x8x32xf32>,
    %cst_98 = arith.constant 1.000000e+00 : f32
    %399 = vector.broadcast %cst_98 : f32 to vector<8x1xf32>
    %400 = arith.subf %399, %392 : vector<8x1xf32>
    %401 = vector.broadcast %400 : vector<8x1xf32> to vector<8x32xf32>
    %402 = arith.mulf %401, %349 : vector<8x32xf32>
    %403 = arith.addf %394, %402 : vector<8x32xf32>
    %c7_i32_99 = arith.constant 7 : i32
    %c1_i32_100 = arith.constant 1 : i32
    %404 = arith.subi %c1_i32_100, %arg0 : i32
    %405 = arith.muli %404, %c7_i32_99 : i32
    %c7_i32_101 = arith.constant 7 : i32
    %406 = arith.subi %c7_i32_101, %c7_i32_99 : i32
    %407 = arith.muli %arg0, %406 : i32
    %408 = arith.addi %405, %407 : i32
    %409 = arith.addi %8, %408 : i32
    %c8_i32_102 = arith.constant 8 : i32
    %410 = arith.muli %408, %c8_i32_102 : i32
    %411 = tpu.assume_multiple %410, 8 : i32
    %412 = arith.index_cast %411 : i32 to index
    %c0_103 = arith.constant 0 : index
    %413 = vector.load %arg10[%412, %c0_103] : memref<64x96xf32, #tpu.memory_space<vmem>>, vector<8x96xf32>
    %414 = arith.truncf %403 : vector<8x32xf32> to vector<8x32xbf16>
    %cst_104 = arith.constant dense<0.000000e+00> : vector<8x96xf32>
    %415 = tpu.matmul %414, %19, %cst_104 {dimension_numbers = #tpu.dot_dimension_numbers<[1], [0], [0], [1], [0, 0, 1, 1], [], []>} : vector<8x32xbf16>, vector<32x96xbf16>, vector<8x96xf32> -> vector<8x96xf32>
    %416 = arith.addf %415, %23 : vector<8x96xf32>
    %417 = vector.extract_strided_slice %413 {offsets = [0, 0], sizes = [8, 32], strides = [1, 1]} : vector<8x96xf32> to vector<8x32xf32>
    %418 = vector.extract_strided_slice %416 {offsets = [0, 0], sizes = [8, 32], strides = [1, 1]} : vector<8x96xf32> to vector<8x32xf32>
    %419 = arith.addf %417, %418 : vector<8x32xf32>
    %420 = arith.negf %419 : vector<8x32xf32>
    %421 = math.exp %420 : vector<8x32xf32>
    %cst_105 = arith.constant 1.000000e+00 : f32
    %422 = vector.broadcast %cst_105 : f32 to vector<8x32xf32>
    %423 = arith.addf %422, %421 : vector<8x32xf32>
    %424 = arith.divf %422, %423 : vector<8x32xf32>
    %425 = vector.extract_strided_slice %413 {offsets = [0, 32], sizes = [8, 32], strides = [1, 1]} : vector<8x96xf32> to vector<8x32xf32>
    %426 = vector.extract_strided_slice %416 {offsets = [0, 32], sizes = [8, 32], strides = [1, 1]} : vector<8x96xf32> to vector<8x32xf32>
    %427 = arith.addf %425, %426 : vector<8x32xf32>
    %428 = arith.negf %427 : vector<8x32xf32>
    %429 = math.exp %428 : vector<8x32xf32>
    %cst_106 = arith.constant 1.000000e+00 : f32
    %430 = vector.broadcast %cst_106 : f32 to vector<8x32xf32>
    %431 = arith.addf %430, %429 : vector<8x32xf32>
    %432 = arith.divf %430, %431 : vector<8x32xf32>
    %433 = vector.extract_strided_slice %413 {offsets = [0, 64], sizes = [8, 32], strides = [1, 1]} : vector<8x96xf32> to vector<8x32xf32>
    %434 = vector.extract_strided_slice %416 {offsets = [0, 64], sizes = [8, 32], strides = [1, 1]} : vector<8x96xf32> to vector<8x32xf32>
    %435 = arith.mulf %424, %434 : vector<8x32xf32>
    %436 = arith.addf %433, %435 : vector<8x32xf32>
    %437 = math.tanh %436 : vector<8x32xf32>
    %cst_107 = arith.constant 1.000000e+00 : f32
    %438 = vector.broadcast %cst_107 : f32 to vector<8x32xf32>
    %439 = arith.subf %438, %432 : vector<8x32xf32>
    %440 = arith.mulf %439, %437 : vector<8x32xf32>
    %441 = arith.mulf %432, %403 : vector<8x32xf32>
    %442 = arith.addf %440, %441 : vector<8x32xf32>
    %443 = vector.broadcast %409 : i32 to vector<8x1xi32>
    %444 = arith.cmpi slt, %443, %24 : vector<8x1xi32>
    %445 = arith.extui %444 : vector<8x1xi1> to vector<8x1xi32>
    %446 = arith.sitofp %445 : vector<8x1xi32> to vector<8x1xf32>
    %447 = vector.broadcast %446 : vector<8x1xf32> to vector<8x32xf32>
    %448 = arith.mulf %447, %442 : vector<8x32xf32>
    %c0_108 = arith.constant 0 : index
    %449 = arith.index_cast %411 : i32 to index
    %c0_109 = arith.constant 0 : index
    %450 = vector.load %arg8[%c0_108, %449, %c0_109] : memref<1x64x32xf32, #tpu.memory_space<vmem>>, vector<1x8x32xf32>
    %451 = vector.shape_cast %450 : vector<1x8x32xf32> to vector<8x32xf32>
    %452 = vector.shape_cast %448 : vector<8x32xf32> to vector<1x8x32xf32>
    tpu.vector_store %arg8[%c0_108, %449, %c0_109], %452 {strides = array<i32>} : memref<1x64x32xf32, #tpu.memory_space<vmem>>, vector<1x8x32xf32>,
    %cst_110 = arith.constant 1.000000e+00 : f32
    %453 = vector.broadcast %cst_110 : f32 to vector<8x1xf32>
    %454 = arith.subf %453, %446 : vector<8x1xf32>
    %455 = vector.broadcast %454 : vector<8x1xf32> to vector<8x32xf32>
    %456 = arith.mulf %455, %403 : vector<8x32xf32>
    %457 = arith.addf %448, %456 : vector<8x32xf32>
    %c8_i32_111 = arith.constant 8 : i32
    %c0_112 = arith.constant 0 : index
    %c0_113 = arith.constant 0 : index
    %458 = vector.load %arg11[%c0_112, %c0_113] : memref<8x32xf32, #tpu.memory_space<vmem>>, vector<8x32xf32>
    tpu.vector_store %arg11[%c0_112, %c0_113], %457 {strides = array<i32>} : memref<8x32xf32, #tpu.memory_space<vmem>>, vector<8x32xf32>,
    %c0_i32_114 = arith.constant 0 : i32
    %459 = arith.cmpi eq, %arg1, %c0_i32_114 : i32
    %460 = arith.extui %459 : i1 to i32
    %c0_i32_115 = arith.constant 0 : i32
    %461 = arith.cmpi ne, %460, %c0_i32_115 : i32
    scf.if %461 {
      %c0_116 = arith.constant 0 : index
      %c0_117 = arith.constant 0 : index
      %c0_118 = arith.constant 0 : index
      %462 = vector.load %arg9[%c0_116, %c0_117, %c0_118] : memref<1x8x32xf32, #tpu.memory_space<vmem>>, vector<1x8x32xf32>
      %463 = vector.shape_cast %462 : vector<1x8x32xf32> to vector<8x32xf32>
      %464 = vector.shape_cast %457 : vector<8x32xf32> to vector<1x8x32xf32>
      tpu.vector_store %arg9[%c0_116, %c0_117, %c0_118], %464 {strides = array<i32>} : memref<1x8x32xf32, #tpu.memory_space<vmem>>, vector<1x8x32xf32>,
    } else {
    }
    return
  }
  func.func @transform_0(%arg0: i32, %arg1: i32) -> (i32, i32) {
    %c0_i32 = arith.constant 0 : i32
    %c0_i32_0 = arith.constant 0 : i32
    %c0_i32_1 = arith.constant 0 : i32
    return %c0_i32, %c0_i32_0 : i32, i32
  }
  func.func @transform_1(%arg0: i32, %arg1: i32) -> (i32, i32) {
    %c1_i32 = arith.constant 1 : i32
    %0 = arith.subi %c1_i32, %arg0 : i32
    %1 = arith.muli %0, %arg1 : i32
    %c0_i32 = arith.constant 0 : i32
    %2 = arith.subi %c0_i32, %arg1 : i32
    %3 = arith.muli %arg0, %2 : i32
    %4 = arith.addi %1, %3 : i32
    %c0_i32_0 = arith.constant 0 : i32
    %c0_i32_1 = arith.constant 0 : i32
    return %4, %c0_i32_0 : i32, i32
  }
  func.func @transform_2(%arg0: i32, %arg1: i32) -> (i32, i32, i32) {
    %c0_i32 = arith.constant 0 : i32
    %c0_i32_0 = arith.constant 0 : i32
    %c0_i32_1 = arith.constant 0 : i32
    return %arg0, %c0_i32, %c0_i32_0 : i32, i32, i32
  }
  func.func @transform_3(%arg0: i32, %arg1: i32) -> (i32, i32, i32) {
    %c0_i32 = arith.constant 0 : i32
    %c0_i32_0 = arith.constant 0 : i32
    %c0_i32_1 = arith.constant 0 : i32
    return %arg0, %c0_i32, %c0_i32_0 : i32, i32, i32
  }
  func.func @transform_4(%arg0: i32, %arg1: i32) -> (i32, i32, i32) {
    %c0_i32 = arith.constant 0 : i32
    %c0_i32_0 = arith.constant 0 : i32
    %c0_i32_1 = arith.constant 0 : i32
    return %arg0, %c0_i32, %c0_i32_0 : i32, i32, i32
  }
  func.func @transform_5(%arg0: i32, %arg1: i32) -> (i32, i32, i32) {
    %c0_i32 = arith.constant 0 : i32
    %c0_i32_0 = arith.constant 0 : i32
    %c0_i32_1 = arith.constant 0 : i32
    return %arg0, %c0_i32, %c0_i32_0 : i32, i32, i32
  }
  func.func @transform_6(%arg0: i32, %arg1: i32) -> (i32, i32, i32) {
    %c1_i32 = arith.constant 1 : i32
    %0 = arith.subi %c1_i32, %arg0 : i32
    %1 = arith.muli %0, %arg1 : i32
    %c0_i32 = arith.constant 0 : i32
    %2 = arith.subi %c0_i32, %arg1 : i32
    %3 = arith.muli %arg0, %2 : i32
    %4 = arith.addi %1, %3 : i32
    %c0_i32_0 = arith.constant 0 : i32
    %c0_i32_1 = arith.constant 0 : i32
    return %arg0, %4, %c0_i32_0 : i32, i32, i32
  }
  func.func @transform_7(%arg0: i32, %arg1: i32) -> (i32, i32, i32) {
    %c0_i32 = arith.constant 0 : i32
    %c0_i32_0 = arith.constant 0 : i32
    %c0_i32_1 = arith.constant 0 : i32
    return %arg0, %c0_i32, %c0_i32_0 : i32, i32, i32
  }
}

</mosaic_0001>

<llo_original>
// kernel: tpu_custom_call.1
$region0: #{tpu_custom_call.1}
  #allocation0 [shape = 'u32[]', space=smem, size = 0x4, offset = 0x4, fixed_abs, tag = 'smem constant byte address 0x4 - core index']
  #allocation1 [shape = 'u32[144,128]{1,0:T(1,128)}', space=vmem, size = 0x12000, scoped, tag = 'internal scratch']
  #allocation2 [shape = 'f32[64,96]{1,0:T(8,128)}', space=vmem, size = 0x8000, scoped, tag = 'scratch operand']
  #allocation3 [shape = 'f32[8,32]{1,0:T(8,128)}', space=vmem, size = 0x1000, scoped, tag = 'scratch operand']
  %s0 = inlined_call_operand.vmem [shape: s32[8,1], index: 0, kind: input, shape index: {}]
  %s1 = inlined_call_operand.vmem [shape: bf16[64,16], index: 1, kind: input, shape index: {}]
  %s2 = inlined_call_operand.vmem [shape: bf16[2,16,96], index: 2, kind: input, shape index: {}]
  %s3 = inlined_call_operand.vmem [shape: bf16[2,32,96], index: 3, kind: input, shape index: {}]
  %s4 = inlined_call_operand.vmem [shape: f32[2,1,96], index: 4, kind: input, shape index: {}]
  %s5 = inlined_call_operand.vmem [shape: f32[2,1,96], index: 5, kind: input, shape index: {}]
  %s6 = inlined_call_operand.vmem [shape: f32[2,64,32], index: 6, kind: output, shape index: {0}]
  %s7 = inlined_call_operand.hbm [shape: f32[2,8,32], index: 7, kind: output, shape index: {1}]
  %8 = xla_tuple %s6, %s7
  %s9 = sld [smem:[#allocation0]]
  $region73: #{tpu_custom_call.1} parent=0
    _
  %s11 = ssub.s32 1, %s9
  %s12 = scalar_select 0, %s11, %s9
  $region1: #{tpu_custom_call.1} parent=0
    #allocation4 [shape = 'u8[8192]{0}', space=vmem, size = 0x2000, scoped, tag = 'output window, operand 1']
    #allocation5 [shape = 's32[2]{0}', space=sflag, size = 0x8, scoped, tag = 'scoped memory for tpu_custom_call.1']
    %13 = vsyncpa [#allocation5], 0
    %s14 = scalar_lea.sflag [#allocation5], 1
    %15 = vsyncpa %s14, 0
    loop: start=0, step=1, limit=4
    $region2: #{tpu_custom_call.1} parent=1 // loop_pre_header
      _
    $region3: #{tpu_custom_call.1} parent=1 // loop_header
      %s17 = sphi 0, %s21
      %p18 = scmp.ge.s32.totalorder %s17, 4
      %s24 = sphi 0, %s36
      %s25 = sphi 0, %s32
      %s26 = sphi 0, %s24
      %s27 = sphi 0, %s25
      %s28 = sphi 0, %s26
      %s29 = sphi 0, %s27
      %s37 = sphi 0, %s37
      %s39 = sphi 0, %s37
      %s40 = sphi 0, %s39
      %s54 = sphi 0, %s40
      %s70 = sphi 0, %s72
      %s73 = sphi 0, %s70
      %s74 = sphi 0, %s73
      %s90 = sphi 0, %s74
      %s96 = sphi 0, %s98
      %s99 = sphi 0, %s96
      %s100 = sphi 0, %s99
      %s116 = sphi 0, %s100
      %s122 = sphi 0, %s124
      %s125 = sphi 0, %s122
      %s126 = sphi 0, %s125
      %s142 = sphi 0, %s126
      %s148 = sphi 0, %s150
      %s151 = sphi 0, %s148
      %s152 = sphi 0, %s151
      %s168 = sphi 0, %s152
      %s174 = sphi 0, %s176
      %s177 = sphi 0, %s174
      %s178 = sphi 0, %s177
      %s194 = sphi 0, %s178
      %s212 = sphi 0, %s214
      %s215 = sphi 0, %s212
      %s216 = sphi 0, %s215
      %s232 = sphi 0, %s216
      %s238 = sphi 0, %s240
      %s241 = sphi 0, %s238
      %s242 = sphi 0, %s241
      %s258 = sphi 0, %s242
    $region4: #{tpu_custom_call.1} parent=1 // loop_header_branch
      %20 = sbr.rel (%p18) target = $region8
    $region5: #{tpu_custom_call.1} parent=1 // loop_body
      %s22 = ssub.s32 %s17, 1
      %s23 = ssub.s32 %s17, 2
      %s30 = sadd.s32 1, %s25
      %p31 = scmp.ge.s32.totalorder %s30, 1
      %s32 = scalar_select %p31, 0, %s30
      %s33 = sadd.s32 1, %s24
      %s34 = scalar_select %p31, %s33, %s24
      %p35 = scmp.ge.s32.totalorder %s34, 2
      %s36 = scalar_select %p35, 0, %s34
      %s38 = sadd.s32 %s37, 1
      %p41 = scmp.eq.s32.totalorder %s17, 1
      %p42 = scmp.ne.s32.totalorder %s37, %s39
      %p43 = scmp.eq.s32.totalorder %s17, 0
      %p44 = por %p42, %p43
      %p45 = scmp.ne.s32.totalorder %s37, %s39
      %p46 = scmp.eq.s32.totalorder %s22, 1
      %p47 = por %p45, %p46
      %p48 = scmp.ne.s32.totalorder %s39, %s40
      %p49 = scmp.eq.s32.totalorder %s22, 0
      %p50 = por %p48, %p49
      %p51 = scmp.ne.s32.totalorder %s39, %s40
      %p52 = scmp.eq.s32.totalorder %s23, 1
      %p53 = por %p51, %p52
      %p55 = scmp.ne.s32.totalorder %s40, %s54
      %p56 = scmp.eq.s32.totalorder %s23, 0
      %p57 = por %p55, %p56
      %s58 = ssub.s32 1, %s24
      %s59 = smul.u32 %s58, %s25
      %s60 = ssub.s32 0, %s25
      %s61 = smul.u32 %s24, %s60
      %s62 = sadd.s32 %s59, %s61
      %s63 = ssub.s32 1, %s36
      %s64 = smul.u32 %s63, %s32
      %s65 = ssub.s32 0, %s32
      %s66 = smul.u32 %s36, %s65
      %s67 = sadd.s32 %s64, %s66
      %s68 = ssub.s32 %s62, %s67
      %p69 = scmp.eq.s32.totalorder %s68, 0
      %s71 = sadd.s32 %s70, 1
      %s72 = scalar_select %p69, %s70, %s71
      %p75 = pneg %p69
      %p76 = scmp.eq.s32.totalorder %s17, 1
      %p77 = por %p75, %p76
      %p78 = scmp.ne.s32.totalorder %s70, %s73
      %p79 = scmp.eq.s32.totalorder %s17, 0
      %p80 = por %p78, %p79
      %p81 = scmp.ne.s32.totalorder %s70, %s73
      %p82 = scmp.eq.s32.totalorder %s22, 1
      %p83 = por %p81, %p82
      %p84 = scmp.ne.s32.totalorder %s73, %s74
      %p85 = scmp.eq.s32.totalorder %s22, 0
      %p86 = por %p84, %p85
      %p87 = scmp.ne.s32.totalorder %s73, %s74
      %p88 = scmp.eq.s32.totalorder %s23, 1
      %p89 = por %p87, %p88
      %p91 = scmp.ne.s32.totalorder %s74, %s90
      %p92 = scmp.eq.s32.totalorder %s23, 0
      %p93 = por %p91, %p92
      %s94 = ssub.s32 %s24, %s36
      %p95 = scmp.eq.s32.totalorder %s94, 0
      %s97 = sadd.s32 %s96, 1
      %s98 = scalar_select %p95, %s96, %s97
      %p101 = pneg %p95
      %p102 = scmp.eq.s32.totalorder %s17, 1
      %p103 = por %p101, %p102
      %p104 = scmp.ne.s32.totalorder %s96, %s99
      %p105 = scmp.eq.s32.totalorder %s17, 0
      %p106 = por %p104, %p105
      %p107 = scmp.ne.s32.totalorder %s96, %s99
      %p108 = scmp.eq.s32.totalorder %s22, 1
      %p109 = por %p107, %p108
      %p110 = scmp.ne.s32.totalorder %s99, %s100
      %p111 = scmp.eq.s32.totalorder %s22, 0
      %p112 = por %p110, %p111
      %p113 = scmp.ne.s32.totalorder %s99, %s100
      %p114 = scmp.eq.s32.totalorder %s23, 1
      %p115 = por %p113, %p114
      %p117 = scmp.ne.s32.totalorder %s100, %s116
      %p118 = scmp.eq.s32.totalorder %s23, 0
      %p119 = por %p117, %p118
      %s120 = ssub.s32 %s24, %s36
      %p121 = scmp.eq.s32.totalorder %s120, 0
      %s123 = sadd.s32 %s122, 1
      %s124 = scalar_select %p121, %s122, %s123
      %p127 = pneg %p121
      %p128 = scmp.eq.s32.totalorder %s17, 1
      %p129 = por %p127, %p128
      %p130 = scmp.ne.s32.totalorder %s122, %s125
      %p131 = scmp.eq.s32.totalorder %s17, 0
      %p132 = por %p130, %p131
      %p133 = scmp.ne.s32.totalorder %s122, %s125
      %p134 = scmp.eq.s32.totalorder %s22, 1
      %p135 = por %p133, %p134
      %p136 = scmp.ne.s32.totalorder %s125, %s126
      %p137 = scmp.eq.s32.totalorder %s22, 0
      %p138 = por %p136, %p137
      %p139 = scmp.ne.s32.totalorder %s125, %s126
      %p140 = scmp.eq.s32.totalorder %s23, 1
      %p141 = por %p139, %p140
      %p143 = scmp.ne.s32.totalorder %s126, %s142
      %p144 = scmp.eq.s32.totalorder %s23, 0
      %p145 = por %p143, %p144
      %s146 = ssub.s32 %s24, %s36
      %p147 = scmp.eq.s32.totalorder %s146, 0
      %s149 = sadd.s32 %s148, 1
      %s150 = scalar_select %p147, %s148, %s149
      %p153 = pneg %p147
      %p154 = scmp.eq.s32.totalorder %s17, 1
      %p155 = por %p153, %p154
      %p156 = scmp.ne.s32.totalorder %s148, %s151
      %p157 = scmp.eq.s32.totalorder %s17, 0
      %p158 = por %p156, %p157
      %p159 = scmp.ne.s32.totalorder %s148, %s151
      %p160 = scmp.eq.s32.totalorder %s22, 1
      %p161 = por %p159, %p160
      %p162 = scmp.ne.s32.totalorder %s151, %s152
      %p163 = scmp.eq.s32.totalorder %s22, 0
      %p164 = por %p162, %p163
      %p165 = scmp.ne.s32.totalorder %s151, %s152
      %p166 = scmp.eq.s32.totalorder %s23, 1
      %p167 = por %p165, %p166
      %p169 = scmp.ne.s32.totalorder %s152, %s168
      %p170 = scmp.eq.s32.totalorder %s23, 0
      %p171 = por %p169, %p170
      %s172 = ssub.s32 %s24, %s36
      %p173 = scmp.eq.s32.totalorder %s172, 0
      %s175 = sadd.s32 %s174, 1
      %s176 = scalar_select %p173, %s174, %s175
      %p179 = pneg %p173
      %p180 = scmp.eq.s32.totalorder %s17, 1
      %p181 = por %p179, %p180
      %p182 = scmp.ne.s32.totalorder %s174, %s177
      %p183 = scmp.eq.s32.totalorder %s17, 0
      %p184 = por %p182, %p183
      %p185 = scmp.ne.s32.totalorder %s174, %s177
      %p186 = scmp.eq.s32.totalorder %s22, 1
      %p187 = por %p185, %p186
      %p188 = scmp.ne.s32.totalorder %s177, %s178
      %p189 = scmp.eq.s32.totalorder %s22, 0
      %p190 = por %p188, %p189
      %p191 = scmp.ne.s32.totalorder %s177, %s178
      %p192 = scmp.eq.s32.totalorder %s23, 1
      %p193 = por %p191, %p192
      %p195 = scmp.ne.s32.totalorder %s178, %s194
      %p196 = scmp.eq.s32.totalorder %s23, 0
      %p197 = por %p195, %p196
      %s198 = ssub.s32 1, %s24
      %s199 = smul.u32 %s198, %s25
      %s200 = ssub.s32 0, %s25
      %s201 = smul.u32 %s24, %s200
      %s202 = sadd.s32 %s199, %s201
      %s203 = ssub.s32 1, %s36
      %s204 = smul.u32 %s203, %s32
      %s205 = ssub.s32 0, %s32
      %s206 = smul.u32 %s36, %s205
      %s207 = sadd.s32 %s204, %s206
      %s208 = ssub.s32 %s24, %s36
      %s209 = ssub.s32 %s202, %s207
      %s210 = sor.u32 %s208, %s209
      %p211 = scmp.eq.s32.totalorder %s210, 0
      %s213 = sadd.s32 %s212, 1
      %s214 = scalar_select %p211, %s212, %s213
      %p217 = pneg %p211
      %p218 = scmp.eq.s32.totalorder %s17, 1
      %p219 = por %p217, %p218
      %p220 = scmp.ne.s32.totalorder %s212, %s215
      %p221 = scmp.eq.s32.totalorder %s17, 0
      %p222 = por %p220, %p221
      %p223 = scmp.ne.s32.totalorder %s212, %s215
      %p224 = scmp.eq.s32.totalorder %s22, 1
      %p225 = por %p223, %p224
      %p226 = scmp.ne.s32.totalorder %s215, %s216
      %p227 = scmp.eq.s32.totalorder %s22, 0
      %p228 = por %p226, %p227
      %p229 = scmp.ne.s32.totalorder %s215, %s216
      %p230 = scmp.eq.s32.totalorder %s23, 1
      %p231 = por %p229, %p230
      %p233 = scmp.ne.s32.totalorder %s216, %s232
      %p234 = scmp.eq.s32.totalorder %s23, 0
      %p235 = por %p233, %p234
      %s236 = ssub.s32 %s24, %s36
      %p237 = scmp.eq.s32.totalorder %s236, 0
      %s239 = sadd.s32 %s238, 1
      %s240 = scalar_select %p237, %s238, %s239
      %p243 = pneg %p237
      %p244 = scmp.eq.s32.totalorder %s17, 1
      %p245 = por %p243, %p244
      %p246 = scmp.ne.s32.totalorder %s238, %s241
      %p247 = scmp.eq.s32.totalorder %s17, 0
      %p248 = por %p246, %p247
      %p249 = scmp.ne.s32.totalorder %s238, %s241
      %p250 = scmp.eq.s32.totalorder %s22, 1
      %p251 = por %p249, %p250
      %p252 = scmp.ne.s32.totalorder %s241, %s242
      %p253 = scmp.eq.s32.totalorder %s22, 0
      %p254 = por %p252, %p253
      %p255 = scmp.ne.s32.totalorder %s241, %s242
      %p256 = scmp.eq.s32.totalorder %s23, 1
      %p257 = por %p255, %p256
      %p259 = scmp.ne.s32.totalorder %s242, %s258
      %p260 = scmp.eq.s32.totalorder %s23, 0
      %p261 = por %p259, %p260
      %p262 = scmp.le.s32.totalorder 1, %s17
      %p263 = scmp.lt.s32.totalorder %s17, 3
      %p264 = pnand %p262, %p263
      %p265 = pneg %p264
      // Predicated region
      $region9: #{tpu_custom_call.1} parent=5 // pred_check
        _
      $region10: #{tpu_custom_call.1} parent=5 // pred_check_branch
        %267 = sbr.rel (%p264) target = $region12
      $region11: #{tpu_custom_call.1} parent=5 // pred_region
        %s268 = ssub.s32 %s17, 1
        // Predicated region
        $region13: #{tpu_custom_call.1} parent=11 // pred_check
          %p269 = pneg %p50
        $region14: #{tpu_custom_call.1} parent=11 // pred_check_branch
          %271 = sbr.rel (%p269) target = $region16
        $region15: #{tpu_custom_call.1} parent=11 // pred_region
          _
        $region16: #{tpu_custom_call.1} parent=11 // pred_fallthru
          _
      $region12: #{tpu_custom_call.1} parent=5 // pred_fallthru
        _
      %p272 = scmp.lt.s32.totalorder %s17, 2
      // Predicated region
      $region17: #{tpu_custom_call.1} parent=5 // pred_check
        %p273 = pneg %p272
      $region18: #{tpu_custom_call.1} parent=5 // pred_check_branch
        %275 = sbr.rel (%p273) target = $region20
      $region19: #{tpu_custom_call.1} parent=5 // pred_region
        // Predicated region
        $region21: #{tpu_custom_call.1} parent=19 // pred_check
          %p276 = pneg %p80
        $region22: #{tpu_custom_call.1} parent=19 // pred_check_branch
          %278 = sbr.rel (%p276) target = $region24
        $region23: #{tpu_custom_call.1} parent=19 // pred_region
          %s279 = ssub.s32 1, %s24
          %s280 = smul.u32 %s279, %s25
          %s281 = ssub.s32 0, %s25
          %s282 = smul.u32 %s24, %s281
          %s283 = sadd.s32 %s280, %s282
          %s284 = smul.u32 8, %s283
          %p285 = scmp.lt.s32.totalorder %s284, 7
          %s286 = scalar_select %p285, %s284, 7
          %s287 = smul.addr %s286, 4
          %s288 = scalar_lea.vmem %s1, %s287
          %s289 = ssub.s32 1, %s24
          %s290 = smul.u32 %s289, %s25
          %s291 = ssub.s32 0, %s25
          %s292 = smul.u32 %s24, %s291
          %s293 = sadd.s32 %s290, %s292
          %s294 = smul.u32 8, %s293
        $region24: #{tpu_custom_call.1} parent=19 // pred_fallthru
          _
        // Predicated region
        $region25: #{tpu_custom_call.1} parent=19 // pred_check
          %p295 = pneg %p106
        $region26: #{tpu_custom_call.1} parent=19 // pred_check_branch
          %297 = sbr.rel (%p295) target = $region28
        $region27: #{tpu_custom_call.1} parent=19 // pred_region
          %p298 = scmp.lt.s32.totalorder %s24, 1
          %s299 = scalar_select %p298, %s24, 1
          %s300 = smul.addr %s299, 2
          %s301 = smul.addr %s300, 4
          %s302 = scalar_lea.vmem %s2, %s301
        $region28: #{tpu_custom_call.1} parent=19 // pred_fallthru
          _
        // Predicated region
        $region29: #{tpu_custom_call.1} parent=19 // pred_check
          %p303 = pneg %p132
        $region30: #{tpu_custom_call.1} parent=19 // pred_check_branch
          %305 = sbr.rel (%p303) target = $region32
        $region31: #{tpu_custom_call.1} parent=19 // pred_region
          %p306 = scmp.lt.s32.totalorder %s24, 1
          %s307 = scalar_select %p306, %s24, 1
          %s308 = smul.addr %s307, 4
          %s309 = smul.addr %s308, 4
          %s310 = scalar_lea.vmem %s3, %s309
        $region32: #{tpu_custom_call.1} parent=19 // pred_fallthru
          _
        // Predicated region
        $region33: #{tpu_custom_call.1} parent=19 // pred_check
          %p311 = pneg %p158
        $region34: #{tpu_custom_call.1} parent=19 // pred_check_branch
          %313 = sbr.rel (%p311) target = $region36
        $region35: #{tpu_custom_call.1} parent=19 // pred_region
          %p314 = scmp.lt.s32.totalorder %s24, 1
          %s315 = scalar_select %p314, %s24, 1
          %s316 = scalar_lea.vmem %s4, %s315
        $region36: #{tpu_custom_call.1} parent=19 // pred_fallthru
          _
        // Predicated region
        $region37: #{tpu_custom_call.1} parent=19 // pred_check
          %p317 = pneg %p184
        $region38: #{tpu_custom_call.1} parent=19 // pred_check_branch
          %319 = sbr.rel (%p317) target = $region40
        $region39: #{tpu_custom_call.1} parent=19 // pred_region
          %p320 = scmp.lt.s32.totalorder %s24, 1
          %s321 = scalar_select %p320, %s24, 1
          %s322 = scalar_lea.vmem %s5, %s321
        $region40: #{tpu_custom_call.1} parent=19 // pred_fallthru
          _
      $region20: #{tpu_custom_call.1} parent=5 // pred_fallthru
        _
      %p323 = scmp.le.s32.totalorder 1, %s17
      %p324 = scmp.lt.s32.totalorder %s17, 3
      %p325 = pnand %p323, %p324
      %p326 = pneg %p325
      // Predicated region
      $region41: #{tpu_custom_call.1} parent=5 // pred_check
        _
      $region42: #{tpu_custom_call.1} parent=5 // pred_check_branch
        %328 = sbr.rel (%p325) target = $region44
      $region43: #{tpu_custom_call.1} parent=5 // pred_region
        %s329 = ssub.s32 %s17, 1
        %p330 = pneg %p50
        %p331 = pneg %p47
        %s332 = ssub.s32 1, %s26
        %s333 = smul.u32 %s332, %s27
        %s334 = ssub.s32 0, %s27
        %s335 = smul.u32 %s26, %s334
        %s336 = sadd.s32 %s333, %s335
        %s337 = smul.u32 8, %s336
        %p338 = scmp.lt.s32.totalorder %s337, 7
        %s339 = scalar_select %p338, %s337, 7
        %s340 = smul.addr %s339, 4
        %s341 = scalar_lea.vmem %s1, %s340
        %p342 = pneg %p86
        %p343 = pneg %p83
        %p344 = scmp.lt.s32.totalorder %s26, 1
        %s345 = scalar_select %p344, %s26, 1
        %s346 = smul.addr %s345, 2
        %s347 = smul.addr %s346, 4
        %s348 = scalar_lea.vmem %s2, %s347
        %p349 = pneg %p112
        %p350 = pneg %p109
        %p351 = scmp.lt.s32.totalorder %s26, 1
        %s352 = scalar_select %p351, %s26, 1
        %s353 = smul.addr %s352, 4
        %s354 = smul.addr %s353, 4
        %s355 = scalar_lea.vmem %s3, %s354
        %p356 = pneg %p138
        %p357 = pneg %p135
        %p358 = scmp.lt.s32.totalorder %s26, 1
        %s359 = scalar_select %p358, %s26, 1
        %s360 = scalar_lea.vmem %s4, %s359
        %p361 = pneg %p164
        %p362 = pneg %p161
        %p363 = scmp.lt.s32.totalorder %s26, 1
        %s364 = scalar_select %p363, %s26, 1
        %s365 = scalar_lea.vmem %s5, %s364
        %p366 = pneg %p190
        %p367 = pneg %p187
        %p368 = pneg %p228
        %p369 = pneg %p225
        %s370 = ssub.s32 1, %s26
        %s371 = smul.u32 %s370, %s27
        %s372 = ssub.s32 0, %s27
        %s373 = smul.u32 %s26, %s372
        %s374 = sadd.s32 %s371, %s373
        %s375 = smul.u32 8, %s374
        %p376 = scmp.lt.s32.totalorder %s26, 1
        %s377 = scalar_select %p376, %s26, 1
        %p378 = scmp.lt.s32.totalorder %s375, 7
        %s379 = scalar_select %p378, %s375, 7
        %s380 = smul.addr %s377, 8
        %s381 = sadd.s32 %s379, %s380
        %s382 = smul.addr %s381, 8
        %s383 = scalar_lea.vmem %s6, %s382
        %p384 = pneg %p254
        %p385 = pneg %p251
        %s386 = sand.u32 %s241, 1
        %s387 = scalar_lea.sflag [#allocation5], %s386
        %s388 = sand.u32 %s241, 1
        %s389 = smul.addr %s388, 8
        %s390 = scalar_lea.vmem [#allocation4], %s389
        %s391 = ssub.s32 1, %s26
        %s392 = smul.u32 %s391, %s27
        %s393 = ssub.s32 0, %s27
        %s394 = smul.u32 %s26, %s393
        %s395 = sadd.s32 %s392, %s394
        %s396 = smul.u32 8, %s395
        %p397 = scmp.lt.s32.totalorder %s396, 7
        %s398 = scalar_select %p397, %s396, 7
        %s399 = smul.addr %s398, 4
        %s400 = scalar_lea.vmem %s1, %s399
        %s401 = ssub.s32 1, %s26
        %s402 = smul.u32 %s401, %s27
        %s403 = ssub.s32 0, %s27
        %s404 = smul.u32 %s26, %s403
        %s405 = sadd.s32 %s402, %s404
        %s406 = smul.u32 8, %s405
        %p407 = scmp.lt.s32.totalorder %s26, 1
        %s408 = scalar_select %p407, %s26, 1
        %s409 = smul.addr %s408, 2
        %s410 = smul.addr %s409, 4
        %s411 = scalar_lea.vmem %s2, %s410
        %p412 = scmp.lt.s32.totalorder %s26, 1
        %s413 = scalar_select %p412, %s26, 1
        %s414 = smul.addr %s413, 4
        %s415 = smul.addr %s414, 4
        %s416 = scalar_lea.vmem %s3, %s415
        %p417 = scmp.lt.s32.totalorder %s26, 1
        %s418 = scalar_select %p417, %s26, 1
        %s419 = scalar_lea.vmem %s4, %s418
        %p420 = scmp.lt.s32.totalorder %s26, 1
        %s421 = scalar_select %p420, %s26, 1
        %s422 = scalar_lea.vmem %s5, %s421
        %s423 = ssub.s32 1, %s26
        %s424 = smul.u32 %s423, %s27
        %s425 = ssub.s32 0, %s27
        %s426 = smul.u32 %s26, %s425
        %s427 = sadd.s32 %s424, %s426
        %s428 = smul.u32 8, %s427
        %p429 = scmp.lt.s32.totalorder %s26, 1
        %s430 = scalar_select %p429, %s26, 1
        %p431 = scmp.lt.s32.totalorder %s428, 7
        %s432 = scalar_select %p431, %s428, 7
        %s433 = smul.addr %s430, 8
        %s434 = sadd.s32 %s432, %s433
        %s435 = smul.addr %s434, 8
        %s436 = scalar_lea.vmem %s6, %s435
        %s437 = ssub.s32 1, %s26
        %s438 = smul.u32 %s437, %s27
        %s439 = ssub.s32 0, %s27
        %s440 = smul.u32 %s26, %s439
        %s441 = sadd.s32 %s438, %s440
        %s442 = smul.u32 8, %s441
        %p444 = scmp.eq.s32.totalorder %s27, 0
        // Predicated region
        $region45: #{tpu_custom_call.1} parent=43 // pred_check
          %p445 = pneg %p444
        $region46: #{tpu_custom_call.1} parent=43 // pred_check_branch
          %447 = sbr.rel (%p445) target = $region48
        $region47: #{tpu_custom_call.1} parent=43 // pred_region
          %vm448 = vcmask 261120
          %449 = vst.msk [vmem:[#allocation3] sm:$0xff] %vm448, 0.0
        $region48: #{tpu_custom_call.1} parent=43 // pred_fallthru
          _
        %s450 = ssub.s32 1, %s26
        %s451 = smul.u32 %s450, %s27
        %s452 = ssub.s32 0, %s27
        %s453 = smul.u32 %s26, %s452
        %s454 = sadd.s32 %s451, %s453
        %s455 = smul.u32 %s454, 8
        %v456 = vld [vmem:[%s400] sm:$0xf]
        %v457 = vld [vmem:[%s400 + $0x4] sm:$0xf]
        %v458 = vld [vmem:[%s400 + $0x8] sm:$0xf]
        %v459 = vld [vmem:[%s400 + $0xc] sm:$0xf]
        %v460 = vld [vmem:[%s400 + $0x10] sm:$0xf]
        %v461 = vld [vmem:[%s400 + $0x14] sm:$0xf]
        %v462 = vld [vmem:[%s400 + $0x18] sm:$0xf]
        %v463 = vld [vmem:[%s400 + $0x1c] sm:$0xf]
        %v464 = vld [vmem:[%s411] sm:$0xf]
        %v465 = vld [vmem:[%s411 + $0x4] sm:$0xf]
        %v466 = vld [vmem:[%s419] sm:$0x1]
        %v468 = vlaneseq
        %v469 = vshrl.u32 %v468, 7
        %v470 = vsub.s32 0, %v469
        %v471 = vrot.slane %v466, %v470
        %v481 = vunpack.c.l.b16 %v456
        %v482 = vunpack.c.l.b16 %v457
        %v483 = vunpack.c.l.b16 %v458
        %v484 = vunpack.c.l.b16 %v459
        %v485 = vunpack.c.l.b16 %v460
        %v486 = vunpack.c.l.b16 %v461
        %v487 = vunpack.c.l.b16 %v462
        %v488 = vunpack.c.l.b16 %v463
        %v489 = vpack.c.b16 %v482, %v481
        %v490 = vpack.c.b16 %v484, %v483
        %v491 = vpack.c.b16 %v486, %v485
        %v492 = vpack.c.b16 %v488, %v487
        %v495 = vunpack.c.l.b16 %v464
        %v496 = vunpack.c.l.b16 %v465
        %v497 = vpack.c.b16 %v496, %v495
        %vm499 = vcmask 130048
        %v501 = vsel %vm499, %v489, 0
        %v504 = vsel %vm499, %v490, 0
        %v507 = vsel %vm499, %v491, 0
        %v510 = vsel %vm499, %v492, 0
        %512 = vmatprep.subr.bf16.mxu0 0
        %513 = vmatpush1.bf16.msra.mxu0 0
        %514 = vmatprep.subr.bf16.mxu0 0
        %515 = vmatpush1.bf16.msra.mxu0 0
        %516 = vmatprep.subr.bf16.mxu0 0
        %517 = vmatpush1.bf16.msra.mxu0 0
        %518 = vmatprep.subr.bf16.mxu0 0
        %519 = vmatpush1.bf16.msra.mxu0 0
        %520 = vmatprep.subr.bf16.mxu0 0
        %521 = vmatpush1.bf16.msra.mxu0 0
        %522 = vmatprep.subr.bf16.mxu0 0
        %523 = vmatpush1.bf16.msra.mxu0 0
        %524 = vmatprep.subr.bf16.mxu0 0
        %525 = vmatpush1.bf16.msra.mxu0 0
        %526 = vmatprep.subr.bf16.mxu0 0
        %527 = vmatpush1.bf16.msra.mxu0 %v497
        %528 = vmatprep.subr.bf16.mxu0 0
        %529 = vmatpush2.bf16.msra.mxu0 0
        %530 = vmatprep.subr.bf16.mxu0 0
        %531 = vmatpush2.bf16.msra.mxu0 0
        %532 = vmatprep.subr.bf16.mxu0 0
        %533 = vmatpush2.bf16.msra.mxu0 0
        %534 = vmatprep.subr.bf16.mxu0 0
        %535 = vmatpush2.bf16.msra.mxu0 0
        %536 = vmatprep.subr.bf16.mxu0 0
        %537 = vmatpush2.bf16.msra.mxu0 0
        %538 = vmatprep.subr.bf16.mxu0 0
        %539 = vmatpush2.bf16.msra.mxu0 0
        %540 = vmatprep.subr.bf16.mxu0 0
        %541 = vmatpush2.bf16.msra.mxu0 0
        %542 = vmatprep.subr.bf16.mxu0 0
        %543 = vmatpush2.bf16.msra.mxu0 0
        %544 = vmatprep.mubr.bf16.mxu0 0
        %545 = vmatmul.mubr.bf16.gmra.mxu0 %v501
        %v546 = vpop.f32.mrf.mxu0
        %v547 = vadd.f32 %v471, %v546
        %v548 = vpop.f32.mrf.mxu0
        %v549 = vpop.f32.mrf.mxu0
        %v550 = vadd.f32 %v471, %v549
        %v551 = vpop.f32.mrf.mxu0
        %552 = vmatprep.mubr.bf16.mxu0 0
        %553 = vmatmul.mubr.bf16.gmra.mxu0 %v504
        %v554 = vpop.f32.mrf.mxu0
        %v555 = vadd.f32 %v471, %v554
        %v556 = vpop.f32.mrf.mxu0
        %v557 = vpop.f32.mrf.mxu0
        %v558 = vadd.f32 %v471, %v557
        %v559 = vpop.f32.mrf.mxu0
        %560 = vmatprep.mubr.bf16.mxu0 0
        %561 = vmatmul.mubr.bf16.gmra.mxu0 %v507
        %v562 = vpop.f32.mrf.mxu0
        %v563 = vadd.f32 %v471, %v562
        %v564 = vpop.f32.mrf.mxu0
        %v565 = vpop.f32.mrf.mxu0
        %v566 = vadd.f32 %v471, %v565
        %v567 = vpop.f32.mrf.mxu0
        %568 = vmatprep.mubr.bf16.mxu0 0
        %569 = vmatmul.mubr.bf16.gmra.mxu0 %v510
        %v570 = vpop.f32.mrf.mxu0
        %v571 = vadd.f32 %v471, %v570
        %v572 = vpop.f32.mrf.mxu0
        %v573 = vpop.f32.mrf.mxu0
        %v574 = vadd.f32 %v471, %v573
        %v575 = vpop.f32.mrf.mxu0
        %576 = vdwg.mxu0
        %vm577 = vcmask 785408
        %578 = vst.msk [vmem:[#allocation2] sm:$0xff] %vm577, %v547
        %579 = vst.msk [vmem:[#allocation2 + $0x8] sm:$0xff] %vm577, %v550
        %580 = vst.msk [vmem:[#allocation2 + $0x10] sm:$0xff] %vm577, %v555
        %581 = vst.msk [vmem:[#allocation2 + $0x18] sm:$0xff] %vm577, %v558
        %582 = vst.msk [vmem:[#allocation2 + $0x20] sm:$0xff] %vm577, %v563
        %583 = vst.msk [vmem:[#allocation2 + $0x28] sm:$0xff] %vm577, %v566
        %584 = vst.msk [vmem:[#allocation2 + $0x30] sm:$0xff] %vm577, %v571
        %585 = vst.msk [vmem:[#allocation2 + $0x38] sm:$0xff] %vm577, %v574
        %v586 = vld [vmem:[%s416] sm:$0xf]
        %v587 = vld [vmem:[%s416 + $0x4] sm:$0xf]
        %v588 = vld [vmem:[%s416 + $0x8] sm:$0xf]
        %v589 = vld [vmem:[%s416 + $0xc] sm:$0xf]
        %v590 = vld [vmem:[%s422] sm:$0x1]
        %v592 = vlaneseq
        %v593 = vshrl.u32 %v592, 7
        %v594 = vsub.s32 0, %v593
        %v595 = vrot.slane %v590, %v594
        %v597 = vld [vmem:[%s0] sm:$0xff]
        %v598 = vld [vmem:[#allocation3] sm:$0xff]
        %s599 = smul.u32 %s26, 7
        %s600 = sadd.s32 %s455, %s599
        %s601 = smul.u32 %s26, 56
        %s602 = scalar_lea.vmem [#allocation2], %s601
        %v603 = vld [vmem:[%s602] sm:$0xff]
        %v604 = vpack.c.bf16 %v598, %v598
        %v609 = vunpack.c.l.b16 %v586
        %v610 = vunpack.c.l.b16 %v587
        %v611 = vunpack.c.l.b16 %v588
        %v612 = vunpack.c.l.b16 %v589
        %v613 = vpack.c.b16 %v610, %v609
        %v614 = vpack.c.b16 %v612, %v611
        %vm617 = vcmask 261120
        %v619 = vsel %vm617, %v604, 0
        %621 = vmatprep.subr.bf16.mxu0 0
        %622 = vmatpush1.bf16.msra.mxu0 0
        %623 = vmatprep.subr.bf16.mxu0 0
        %624 = vmatpush1.bf16.msra.mxu0 0
        %625 = vmatprep.subr.bf16.mxu0 0
        %626 = vmatpush1.bf16.msra.mxu0 0
        %627 = vmatprep.subr.bf16.mxu0 0
        %628 = vmatpush1.bf16.msra.mxu0 0
        %629 = vmatprep.subr.bf16.mxu0 0
        %630 = vmatpush1.bf16.msra.mxu0 0
        %631 = vmatprep.subr.bf16.mxu0 0
        %632 = vmatpush1.bf16.msra.mxu0 0
        %633 = vmatprep.subr.bf16.mxu0 0
        %634 = vmatpush1.bf16.msra.mxu0 %v614
        %635 = vmatprep.subr.bf16.mxu0 0
        %636 = vmatpush1.bf16.msra.mxu0 %v613
        %637 = vmatprep.subr.bf16.mxu0 0
        %638 = vmatpush2.bf16.msra.mxu0 0
        %639 = vmatprep.subr.bf16.mxu0 0
        %640 = vmatpush2.bf16.msra.mxu0 0
        %641 = vmatprep.subr.bf16.mxu0 0
        %642 = vmatpush2.bf16.msra.mxu0 0
        %643 = vmatprep.subr.bf16.mxu0 0
        %644 = vmatpush2.bf16.msra.mxu0 0
        %645 = vmatprep.subr.bf16.mxu0 0
        %646 = vmatpush2.bf16.msra.mxu0 0
        %647 = vmatprep.subr.bf16.mxu0 0
        %648 = vmatpush2.bf16.msra.mxu0 0
        %649 = vmatprep.subr.bf16.mxu0 0
        %650 = vmatpush2.bf16.msra.mxu0 0
        %651 = vmatprep.subr.bf16.mxu0 0
        %652 = vmatpush2.bf16.msra.mxu0 0
        %653 = vmatprep.mubr.bf16.mxu0 0
        %654 = vmatmul.mubr.bf16.gmra.mxu0 %v619
        %v655 = vpop.f32.mrf.mxu0
        %v656 = vadd.f32 %v595, %v655
        %v657 = vpop.f32.mrf.mxu0
        %v658 = vpop.f32.mrf.mxu0
        %v659 = vpop.f32.mrf.mxu0
        %660 = vdwg.mxu0
        %v661 = vadd.f32 %v603, %v656
        %v662 = vxor.u32 %v661, 2147483648
        %v663 = vmul.f32 %v662, 1.442695
        %v664 = vpow.pop %v663
        %v665 = vadd.f32 %v664, 1.0
        %v666 = vrcp.pop %v665
        %v667 = vmul.f32 1.0, %v666
        %669 = vrot.lane.b32.xlu0 %v656, 64
        %v670 = vpop.permute.xlu0 %669
        %v672 = vmul.f32 %v667, %v670
        %674 = vrot.lane.b32.xlu0 %v672, 64
        %v675 = vpop.permute.xlu0 %674
        %v677 = vadd.f32 %v603, %v675
        %v678 = vtanh.pop %v677
        %v679 = vsub.f32 1.0, %v667
        %681 = vrot.lane.b32.xlu0 %v678, 96
        %v682 = vpop.permute.xlu0 %681
        %v684 = vmul.f32 %v679, %v682
        %686 = vrot.lane.b32.xlu0 %v598, 32
        %v687 = vpop.permute.xlu0 %686
        %v689 = vmul.f32 %v667, %v687
        %v690 = vadd.f32 %v684, %v689
        %v691 = vstv %s600
        %vm692 = vcmp.lt.s32.totalorder %v691, %v597
        %v693 = vsel %vm692, 1, 0
        %v694 = vcvt.s32.f32 %v693
        %696 = vset.pattern.permute.xlu0 0
        %697 = vperm.xlu0 %696, %v694
        %v698 = vpop.permute.xlu0 %697
        %v700 = vmul.f32 %v698, %v690
        %702 = vrot.lane.b32.xlu0 %v700, 96
        %v703 = vpop.permute.xlu0 %702
        %s705 = scalar_lea.vmem %s436, %s601
        %706 = vst.msk [vmem:[%s705] sm:$0xff] %vm617, %v703
        %v707 = vsub.f32 1.0, %v694
        %709 = vset.pattern.permute.xlu0 0
        %710 = vperm.xlu0 %709, %v707
        %v711 = vpop.permute.xlu0 %710
        %v713 = vmul.f32 %v711, %v598
        %715 = vrot.lane.b32.xlu0 %v713, 32
        %v716 = vpop.permute.xlu0 %715
        %v718 = vadd.f32 %v700, %v716
        %s719 = smul.u32 %s26, 6
        %s720 = sadd.s32 %s450, %s719
        %s721 = sadd.s32 %s455, %s720
        %s722 = smul.u32 %s720, 8
        %s723 = scalar_lea.vmem [#allocation2], %s722
        %v724 = vld [vmem:[%s723] sm:$0xff]
        %v725 = vpack.c.bf16 %v718, %v718
        %727 = vrot.lane.b32.xlu0 %v725, 96
        %v728 = vpop.permute.xlu0 %727
        %v730 = vsel %vm617, %v728, 0
        %732 = vmatprep.subr.bf16.mxu0 0
        %733 = vmatpush1.bf16.msra.mxu0 0
        %734 = vmatprep.subr.bf16.mxu0 0
        %735 = vmatpush1.bf16.msra.mxu0 0
        %736 = vmatprep.subr.bf16.mxu0 0
        %737 = vmatpush1.bf16.msra.mxu0 0
        %738 = vmatprep.subr.bf16.mxu0 0
        %739 = vmatpush1.bf16.msra.mxu0 0
        %740 = vmatprep.subr.bf16.mxu0 0
        %741 = vmatpush1.bf16.msra.mxu0 0
        %742 = vmatprep.subr.bf16.mxu0 0
        %743 = vmatpush1.bf16.msra.mxu0 0
        %744 = vmatprep.subr.bf16.mxu0 0
        %745 = vmatpush1.bf16.msra.mxu0 %v614
        %746 = vmatprep.subr.bf16.mxu0 0
        %747 = vmatpush1.bf16.msra.mxu0 %v613
        %748 = vmatprep.subr.bf16.mxu0 0
        %749 = vmatpush2.bf16.msra.mxu0 0
        %750 = vmatprep.subr.bf16.mxu0 0
        %751 = vmatpush2.bf16.msra.mxu0 0
        %752 = vmatprep.subr.bf16.mxu0 0
        %753 = vmatpush2.bf16.msra.mxu0 0
        %754 = vmatprep.subr.bf16.mxu0 0
        %755 = vmatpush2.bf16.msra.mxu0 0
        %756 = vmatprep.subr.bf16.mxu0 0
        %757 = vmatpush2.bf16.msra.mxu0 0
        %758 = vmatprep.subr.bf16.mxu0 0
        %759 = vmatpush2.bf16.msra.mxu0 0
        %760 = vmatprep.subr.bf16.mxu0 0
        %761 = vmatpush2.bf16.msra.mxu0 0
        %762 = vmatprep.subr.bf16.mxu0 0
        %763 = vmatpush2.bf16.msra.mxu0 0
        %764 = vmatprep.mubr.bf16.mxu0 0
        %765 = vmatmul.mubr.bf16.gmra.mxu0 %v730
        %v766 = vpop.f32.mrf.mxu0
        %v767 = vadd.f32 %v595, %v766
        %v768 = vpop.f32.mrf.mxu0
        %v769 = vpop.f32.mrf.mxu0
        %v770 = vpop.f32.mrf.mxu0
        %771 = vdwg.mxu0
        %v772 = vadd.f32 %v724, %v767
        %v773 = vxor.u32 %v772, 2147483648
        %v774 = vmul.f32 %v773, 1.442695
        %v775 = vpow.pop %v774
        %v776 = vadd.f32 %v775, 1.0
        %v777 = vrcp.pop %v776
        %v778 = vmul.f32 1.0, %v777
        %780 = vrot.lane.b32.xlu0 %v767, 64
        %v781 = vpop.permute.xlu0 %780
        %v783 = vmul.f32 %v778, %v781
        %785 = vrot.lane.b32.xlu0 %v783, 64
        %v786 = vpop.permute.xlu0 %785
        %v788 = vadd.f32 %v724, %v786
        %v789 = vtanh.pop %v788
        %v790 = vsub.f32 1.0, %v778
        %792 = vrot.lane.b32.xlu0 %v789, 96
        %v793 = vpop.permute.xlu0 %792
        %v795 = vmul.f32 %v790, %v793
        %v796 = vmul.f32 %v778, %v718
        %v797 = vadd.f32 %v795, %v796
        %v798 = vstv %s721
        %vm799 = vcmp.lt.s32.totalorder %v798, %v597
        %v800 = vsel %vm799, 1, 0
        %v801 = vcvt.s32.f32 %v800
        %803 = vset.pattern.permute.xlu0 0
        %804 = vperm.xlu0 %803, %v801
        %v805 = vpop.permute.xlu0 %804
        %v807 = vmul.f32 %v805, %v797
        %809 = vrot.lane.b32.xlu0 %v807, 96
        %v810 = vpop.permute.xlu0 %809
        %s812 = scalar_lea.vmem %s436, %s722
        %813 = vst.msk [vmem:[%s812] sm:$0xff] %vm617, %v810
        %v814 = vsub.f32 1.0, %v801
        %816 = vset.pattern.permute.xlu0 0
        %817 = vperm.xlu0 %816, %v814
        %v818 = vpop.permute.xlu0 %817
        %v820 = vmul.f32 %v818, %v718
        %v821 = vadd.f32 %v807, %v820
        %s822 = smul.u32 %s450, 2
        %s823 = smul.u32 %s26, 5
        %s824 = sadd.s32 %s822, %s823
        %s825 = sadd.s32 %s455, %s824
        %s826 = smul.u32 %s824, 8
        %s827 = scalar_lea.vmem [#allocation2], %s826
        %v828 = vld [vmem:[%s827] sm:$0xff]
        %v829 = vpack.c.bf16 %v821, %v821
        %831 = vrot.lane.b32.xlu0 %v829, 96
        %v832 = vpop.permute.xlu0 %831
        %v834 = vsel %vm617, %v832, 0
        %836 = vmatprep.subr.bf16.mxu0 0
        %837 = vmatpush1.bf16.msra.mxu0 0
        %838 = vmatprep.subr.bf16.mxu0 0
        %839 = vmatpush1.bf16.msra.mxu0 0
        %840 = vmatprep.subr.bf16.mxu0 0
        %841 = vmatpush1.bf16.msra.mxu0 0
        %842 = vmatprep.subr.bf16.mxu0 0
        %843 = vmatpush1.bf16.msra.mxu0 0
        %844 = vmatprep.subr.bf16.mxu0 0
        %845 = vmatpush1.bf16.msra.mxu0 0
        %846 = vmatprep.subr.bf16.mxu0 0
        %847 = vmatpush1.bf16.msra.mxu0 0
        %848 = vmatprep.subr.bf16.mxu0 0
        %849 = vmatpush1.bf16.msra.mxu0 %v614
        %850 = vmatprep.subr.bf16.mxu0 0
        %851 = vmatpush1.bf16.msra.mxu0 %v613
        %852 = vmatprep.subr.bf16.mxu0 0
        %853 = vmatpush2.bf16.msra.mxu0 0
        %854 = vmatprep.subr.bf16.mxu0 0
        %855 = vmatpush2.bf16.msra.mxu0 0
        %856 = vmatprep.subr.bf16.mxu0 0
        %857 = vmatpush2.bf16.msra.mxu0 0
        %858 = vmatprep.subr.bf16.mxu0 0
        %859 = vmatpush2.bf16.msra.mxu0 0
        %860 = vmatprep.subr.bf16.mxu0 0
        %861 = vmatpush2.bf16.msra.mxu0 0
        %862 = vmatprep.subr.bf16.mxu0 0
        %863 = vmatpush2.bf16.msra.mxu0 0
        %864 = vmatprep.subr.bf16.mxu0 0
        %865 = vmatpush2.bf16.msra.mxu0 0
        %866 = vmatprep.subr.bf16.mxu0 0
        %867 = vmatpush2.bf16.msra.mxu0 0
        %868 = vmatprep.mubr.bf16.mxu0 0
        %869 = vmatmul.mubr.bf16.gmra.mxu0 %v834
        %v870 = vpop.f32.mrf.mxu0
        %v871 = vadd.f32 %v595, %v870
        %v872 = vpop.f32.mrf.mxu0
        %v873 = vpop.f32.mrf.mxu0
        %v874 = vpop.f32.mrf.mxu0
        %875 = vdwg.mxu0
        %v876 = vadd.f32 %v828, %v871
        %v877 = vxor.u32 %v876, 2147483648
        %v878 = vmul.f32 %v877, 1.442695
        %v879 = vpow.pop %v878
        %v880 = vadd.f32 %v879, 1.0
        %v881 = vrcp.pop %v880
        %v882 = vmul.f32 1.0, %v881
        %884 = vrot.lane.b32.xlu0 %v871, 64
        %v885 = vpop.permute.xlu0 %884
        %v887 = vmul.f32 %v882, %v885
        %889 = vrot.lane.b32.xlu0 %v887, 64
        %v890 = vpop.permute.xlu0 %889
        %v892 = vadd.f32 %v828, %v890
        %v893 = vtanh.pop %v892
        %v894 = vsub.f32 1.0, %v882
        %896 = vrot.lane.b32.xlu0 %v893, 96
        %v897 = vpop.permute.xlu0 %896
        %v899 = vmul.f32 %v894, %v897
        %v900 = vmul.f32 %v882, %v821
        %v901 = vadd.f32 %v899, %v900
        %v902 = vstv %s825
        %vm903 = vcmp.lt.s32.totalorder %v902, %v597
        %v904 = vsel %vm903, 1, 0
        %v905 = vcvt.s32.f32 %v904
        %907 = vset.pattern.permute.xlu0 0
        %908 = vperm.xlu0 %907, %v905
        %v909 = vpop.permute.xlu0 %908
        %v911 = vmul.f32 %v909, %v901
        %913 = vrot.lane.b32.xlu0 %v911, 96
        %v914 = vpop.permute.xlu0 %913
        %s916 = scalar_lea.vmem %s436, %s826
        %917 = vst.msk [vmem:[%s916] sm:$0xff] %vm617, %v914
        %v918 = vsub.f32 1.0, %v905
        %920 = vset.pattern.permute.xlu0 0
        %921 = vperm.xlu0 %920, %v918
        %v922 = vpop.permute.xlu0 %921
        %v924 = vmul.f32 %v922, %v821
        %v925 = vadd.f32 %v911, %v924
        %s926 = smul.u32 %s450, 3
        %s927 = smul.u32 %s26, 4
        %s928 = sadd.s32 %s926, %s927
        %s929 = sadd.s32 %s455, %s928
        %s930 = smul.u32 %s928, 8
        %s931 = scalar_lea.vmem [#allocation2], %s930
        %v932 = vld [vmem:[%s931] sm:$0xff]
        %v933 = vpack.c.bf16 %v925, %v925
        %935 = vrot.lane.b32.xlu0 %v933, 96
        %v936 = vpop.permute.xlu0 %935
        %v938 = vsel %vm617, %v936, 0
        %940 = vmatprep.subr.bf16.mxu0 0
        %941 = vmatpush1.bf16.msra.mxu0 0
        %942 = vmatprep.subr.bf16.mxu0 0
        %943 = vmatpush1.bf16.msra.mxu0 0
        %944 = vmatprep.subr.bf16.mxu0 0
        %945 = vmatpush1.bf16.msra.mxu0 0
        %946 = vmatprep.subr.bf16.mxu0 0
        %947 = vmatpush1.bf16.msra.mxu0 0
        %948 = vmatprep.subr.bf16.mxu0 0
        %949 = vmatpush1.bf16.msra.mxu0 0
        %950 = vmatprep.subr.bf16.mxu0 0
        %951 = vmatpush1.bf16.msra.mxu0 0
        %952 = vmatprep.subr.bf16.mxu0 0
        %953 = vmatpush1.bf16.msra.mxu0 %v614
        %954 = vmatprep.subr.bf16.mxu0 0
        %955 = vmatpush1.bf16.msra.mxu0 %v613
        %956 = vmatprep.subr.bf16.mxu0 0
        %957 = vmatpush2.bf16.msra.mxu0 0
        %958 = vmatprep.subr.bf16.mxu0 0
        %959 = vmatpush2.bf16.msra.mxu0 0
        %960 = vmatprep.subr.bf16.mxu0 0
        %961 = vmatpush2.bf16.msra.mxu0 0
        %962 = vmatprep.subr.bf16.mxu0 0
        %963 = vmatpush2.bf16.msra.mxu0 0
        %964 = vmatprep.subr.bf16.mxu0 0
        %965 = vmatpush2.bf16.msra.mxu0 0
        %966 = vmatprep.subr.bf16.mxu0 0
        %967 = vmatpush2.bf16.msra.mxu0 0
        %968 = vmatprep.subr.bf16.mxu0 0
        %969 = vmatpush2.bf16.msra.mxu0 0
        %970 = vmatprep.subr.bf16.mxu0 0
        %971 = vmatpush2.bf16.msra.mxu0 0
        %972 = vmatprep.mubr.bf16.mxu0 0
        %973 = vmatmul.mubr.bf16.gmra.mxu0 %v938
        %v974 = vpop.f32.mrf.mxu0
        %v975 = vadd.f32 %v595, %v974
        %v976 = vpop.f32.mrf.mxu0
        %v977 = vpop.f32.mrf.mxu0
        %v978 = vpop.f32.mrf.mxu0
        %979 = vdwg.mxu0
        %v980 = vadd.f32 %v932, %v975
        %v981 = vxor.u32 %v980, 2147483648
        %v982 = vmul.f32 %v981, 1.442695
        %v983 = vpow.pop %v982
        %v984 = vadd.f32 %v983, 1.0
        %v985 = vrcp.pop %v984
        %v986 = vmul.f32 1.0, %v985
        %988 = vrot.lane.b32.xlu0 %v975, 64
        %v989 = vpop.permute.xlu0 %988
        %v991 = vmul.f32 %v986, %v989
        %993 = vrot.lane.b32.xlu0 %v991, 64
        %v994 = vpop.permute.xlu0 %993
        %v996 = vadd.f32 %v932, %v994
        %v997 = vtanh.pop %v996
        %v998 = vsub.f32 1.0, %v986
        %1000 = vrot.lane.b32.xlu0 %v997, 96
        %v1001 = vpop.permute.xlu0 %1000
        %v1003 = vmul.f32 %v998, %v1001
        %v1004 = vmul.f32 %v986, %v925
        %v1005 = vadd.f32 %v1003, %v1004
        %v1006 = vstv %s929
        %vm1007 = vcmp.lt.s32.totalorder %v1006, %v597
        %v1008 = vsel %vm1007, 1, 0
        %v1009 = vcvt.s32.f32 %v1008
        %1011 = vset.pattern.permute.xlu0 0
        %1012 = vperm.xlu0 %1011, %v1009
        %v1013 = vpop.permute.xlu0 %1012
        %v1015 = vmul.f32 %v1013, %v1005
        %1017 = vrot.lane.b32.xlu0 %v1015, 96
        %v1018 = vpop.permute.xlu0 %1017
        %s1020 = scalar_lea.vmem %s436, %s930
        %1021 = vst.msk [vmem:[%s1020] sm:$0xff] %vm617, %v1018
        %v1022 = vsub.f32 1.0, %v1009
        %1024 = vset.pattern.permute.xlu0 0
        %1025 = vperm.xlu0 %1024, %v1022
        %v1026 = vpop.permute.xlu0 %1025
        %v1028 = vmul.f32 %v1026, %v925
        %v1029 = vadd.f32 %v1015, %v1028
        %s1030 = smul.u32 %s450, 4
        %s1031 = smul.u32 %s26, 3
        %s1032 = sadd.s32 %s1030, %s1031
        %s1033 = sadd.s32 %s455, %s1032
        %s1034 = smul.u32 %s1032, 8
        %s1035 = scalar_lea.vmem [#allocation2], %s1034
        %v1036 = vld [vmem:[%s1035] sm:$0xff]
        %v1037 = vpack.c.bf16 %v1029, %v1029
        %1039 = vrot.lane.b32.xlu0 %v1037, 96
        %v1040 = vpop.permute.xlu0 %1039
        %v1042 = vsel %vm617, %v1040, 0
        %1044 = vmatprep.subr.bf16.mxu0 0
        %1045 = vmatpush1.bf16.msra.mxu0 0
        %1046 = vmatprep.subr.bf16.mxu0 0
        %1047 = vmatpush1.bf16.msra.mxu0 0
        %1048 = vmatprep.subr.bf16.mxu0 0
        %1049 = vmatpush1.bf16.msra.mxu0 0
        %1050 = vmatprep.subr.bf16.mxu0 0
        %1051 = vmatpush1.bf16.msra.mxu0 0
        %1052 = vmatprep.subr.bf16.mxu0 0
        %1053 = vmatpush1.bf16.msra.mxu0 0
        %1054 = vmatprep.subr.bf16.mxu0 0
        %1055 = vmatpush1.bf16.msra.mxu0 0
        %1056 = vmatprep.subr.bf16.mxu0 0
        %1057 = vmatpush1.bf16.msra.mxu0 %v614
        %1058 = vmatprep.subr.bf16.mxu0 0
        %1059 = vmatpush1.bf16.msra.mxu0 %v613
        %1060 = vmatprep.subr.bf16.mxu0 0
        %1061 = vmatpush2.bf16.msra.mxu0 0
        %1062 = vmatprep.subr.bf16.mxu0 0
        %1063 = vmatpush2.bf16.msra.mxu0 0
        %1064 = vmatprep.subr.bf16.mxu0 0
        %1065 = vmatpush2.bf16.msra.mxu0 0
        %1066 = vmatprep.subr.bf16.mxu0 0
        %1067 = vmatpush2.bf16.msra.mxu0 0
        %1068 = vmatprep.subr.bf16.mxu0 0
        %1069 = vmatpush2.bf16.msra.mxu0 0
        %1070 = vmatprep.subr.bf16.mxu0 0
        %1071 = vmatpush2.bf16.msra.mxu0 0
        %1072 = vmatprep.subr.bf16.mxu0 0
        %1073 = vmatpush2.bf16.msra.mxu0 0
        %1074 = vmatprep.subr.bf16.mxu0 0
        %1075 = vmatpush2.bf16.msra.mxu0 0
        %1076 = vmatprep.mubr.bf16.mxu0 0
        %1077 = vmatmul.mubr.bf16.gmra.mxu0 %v1042
        %v1078 = vpop.f32.mrf.mxu0
        %v1079 = vadd.f32 %v595, %v1078
        %v1080 = vpop.f32.mrf.mxu0
        %v1081 = vpop.f32.mrf.mxu0
        %v1082 = vpop.f32.mrf.mxu0
        %1083 = vdwg.mxu0
        %v1084 = vadd.f32 %v1036, %v1079
        %v1085 = vxor.u32 %v1084, 2147483648
        %v1086 = vmul.f32 %v1085, 1.442695
        %v1087 = vpow.pop %v1086
        %v1088 = vadd.f32 %v1087, 1.0
        %v1089 = vrcp.pop %v1088
        %v1090 = vmul.f32 1.0, %v1089
        %1092 = vrot.lane.b32.xlu0 %v1079, 64
        %v1093 = vpop.permute.xlu0 %1092
        %v1095 = vmul.f32 %v1090, %v1093
        %1097 = vrot.lane.b32.xlu0 %v1095, 64
        %v1098 = vpop.permute.xlu0 %1097
        %v1100 = vadd.f32 %v1036, %v1098
        %v1101 = vtanh.pop %v1100
        %v1102 = vsub.f32 1.0, %v1090
        %1104 = vrot.lane.b32.xlu0 %v1101, 96
        %v1105 = vpop.permute.xlu0 %1104
        %v1107 = vmul.f32 %v1102, %v1105
        %v1108 = vmul.f32 %v1090, %v1029
        %v1109 = vadd.f32 %v1107, %v1108
        %v1110 = vstv %s1033
        %vm1111 = vcmp.lt.s32.totalorder %v1110, %v597
        %v1112 = vsel %vm1111, 1, 0
        %v1113 = vcvt.s32.f32 %v1112
        %1115 = vset.pattern.permute.xlu0 0
        %1116 = vperm.xlu0 %1115, %v1113
        %v1117 = vpop.permute.xlu0 %1116
        %v1119 = vmul.f32 %v1117, %v1109
        %1121 = vrot.lane.b32.xlu0 %v1119, 96
        %v1122 = vpop.permute.xlu0 %1121
        %s1124 = scalar_lea.vmem %s436, %s1034
        %1125 = vst.msk [vmem:[%s1124] sm:$0xff] %vm617, %v1122
        %v1126 = vsub.f32 1.0, %v1113
        %1128 = vset.pattern.permute.xlu0 0
        %1129 = vperm.xlu0 %1128, %v1126
        %v1130 = vpop.permute.xlu0 %1129
        %v1132 = vmul.f32 %v1130, %v1029
        %v1133 = vadd.f32 %v1119, %v1132
        %s1134 = smul.u32 %s450, 5
        %s1135 = smul.u32 %s26, 2
        %s1136 = sadd.s32 %s1134, %s1135
        %s1137 = sadd.s32 %s455, %s1136
        %s1138 = smul.u32 %s1136, 8
        %s1139 = scalar_lea.vmem [#allocation2], %s1138
        %v1140 = vld [vmem:[%s1139] sm:$0xff]
        %v1141 = vpack.c.bf16 %v1133, %v1133
        %1143 = vrot.lane.b32.xlu0 %v1141, 96
        %v1144 = vpop.permute.xlu0 %1143
        %v1146 = vsel %vm617, %v1144, 0
        %1148 = vmatprep.subr.bf16.mxu0 0
        %1149 = vmatpush1.bf16.msra.mxu0 0
        %1150 = vmatprep.subr.bf16.mxu0 0
        %1151 = vmatpush1.bf16.msra.mxu0 0
        %1152 = vmatprep.subr.bf16.mxu0 0
        %1153 = vmatpush1.bf16.msra.mxu0 0
        %1154 = vmatprep.subr.bf16.mxu0 0
        %1155 = vmatpush1.bf16.msra.mxu0 0
        %1156 = vmatprep.subr.bf16.mxu0 0
        %1157 = vmatpush1.bf16.msra.mxu0 0
        %1158 = vmatprep.subr.bf16.mxu0 0
        %1159 = vmatpush1.bf16.msra.mxu0 0
        %1160 = vmatprep.subr.bf16.mxu0 0
        %1161 = vmatpush1.bf16.msra.mxu0 %v614
        %1162 = vmatprep.subr.bf16.mxu0 0
        %1163 = vmatpush1.bf16.msra.mxu0 %v613
        %1164 = vmatprep.subr.bf16.mxu0 0
        %1165 = vmatpush2.bf16.msra.mxu0 0
        %1166 = vmatprep.subr.bf16.mxu0 0
        %1167 = vmatpush2.bf16.msra.mxu0 0
        %1168 = vmatprep.subr.bf16.mxu0 0
        %1169 = vmatpush2.bf16.msra.mxu0 0
        %1170 = vmatprep.subr.bf16.mxu0 0
        %1171 = vmatpush2.bf16.msra.mxu0 0
        %1172 = vmatprep.subr.bf16.mxu0 0
        %1173 = vmatpush2.bf16.msra.mxu0 0
        %1174 = vmatprep.subr.bf16.mxu0 0
        %1175 = vmatpush2.bf16.msra.mxu0 0
        %1176 = vmatprep.subr.bf16.mxu0 0
        %1177 = vmatpush2.bf16.msra.mxu0 0
        %1178 = vmatprep.subr.bf16.mxu0 0
        %1179 = vmatpush2.bf16.msra.mxu0 0
        %1180 = vmatprep.mubr.bf16.mxu0 0
        %1181 = vmatmul.mubr.bf16.gmra.mxu0 %v1146
        %v1182 = vpop.f32.mrf.mxu0
        %v1183 = vadd.f32 %v595, %v1182
        %v1184 = vpop.f32.mrf.mxu0
        %v1185 = vpop.f32.mrf.mxu0
        %v1186 = vpop.f32.mrf.mxu0
        %1187 = vdwg.mxu0
        %v1188 = vadd.f32 %v1140, %v1183
        %v1189 = vxor.u32 %v1188, 2147483648
        %v1190 = vmul.f32 %v1189, 1.442695
        %v1191 = vpow.pop %v1190
        %v1192 = vadd.f32 %v1191, 1.0
        %v1193 = vrcp.pop %v1192
        %v1194 = vmul.f32 1.0, %v1193
        %1196 = vrot.lane.b32.xlu0 %v1183, 64
        %v1197 = vpop.permute.xlu0 %1196
        %v1199 = vmul.f32 %v1194, %v1197
        %1201 = vrot.lane.b32.xlu0 %v1199, 64
        %v1202 = vpop.permute.xlu0 %1201
        %v1204 = vadd.f32 %v1140, %v1202
        %v1205 = vtanh.pop %v1204
        %v1206 = vsub.f32 1.0, %v1194
        %1208 = vrot.lane.b32.xlu0 %v1205, 96
        %v1209 = vpop.permute.xlu0 %1208
        %v1211 = vmul.f32 %v1206, %v1209
        %v1212 = vmul.f32 %v1194, %v1133
        %v1213 = vadd.f32 %v1211, %v1212
        %v1214 = vstv %s1137
        %vm1215 = vcmp.lt.s32.totalorder %v1214, %v597
        %v1216 = vsel %vm1215, 1, 0
        %v1217 = vcvt.s32.f32 %v1216
        %1219 = vset.pattern.permute.xlu0 0
        %1220 = vperm.xlu0 %1219, %v1217
        %v1221 = vpop.permute.xlu0 %1220
        %v1223 = vmul.f32 %v1221, %v1213
        %1225 = vrot.lane.b32.xlu0 %v1223, 96
        %v1226 = vpop.permute.xlu0 %1225
        %s1228 = scalar_lea.vmem %s436, %s1138
        %1229 = vst.msk [vmem:[%s1228] sm:$0xff] %vm617, %v1226
        %v1230 = vsub.f32 1.0, %v1217
        %1232 = vset.pattern.permute.xlu0 0
        %1233 = vperm.xlu0 %1232, %v1230
        %v1234 = vpop.permute.xlu0 %1233
        %v1236 = vmul.f32 %v1234, %v1133
        %v1237 = vadd.f32 %v1223, %v1236
        %s1238 = smul.u32 %s450, 6
        %s1239 = sadd.s32 %s1238, %s26
        %s1240 = sadd.s32 %s455, %s1239
        %s1241 = smul.u32 %s1239, 8
        %s1242 = scalar_lea.vmem [#allocation2], %s1241
        %v1243 = vld [vmem:[%s1242] sm:$0xff]
        %v1244 = vpack.c.bf16 %v1237, %v1237
        %1246 = vrot.lane.b32.xlu0 %v1244, 96
        %v1247 = vpop.permute.xlu0 %1246
        %v1249 = vsel %vm617, %v1247, 0
        %1251 = vmatprep.subr.bf16.mxu0 0
        %1252 = vmatpush1.bf16.msra.mxu0 0
        %1253 = vmatprep.subr.bf16.mxu0 0
        %1254 = vmatpush1.bf16.msra.mxu0 0
        %1255 = vmatprep.subr.bf16.mxu0 0
        %1256 = vmatpush1.bf16.msra.mxu0 0
        %1257 = vmatprep.subr.bf16.mxu0 0
        %1258 = vmatpush1.bf16.msra.mxu0 0
        %1259 = vmatprep.subr.bf16.mxu0 0
        %1260 = vmatpush1.bf16.msra.mxu0 0
        %1261 = vmatprep.subr.bf16.mxu0 0
        %1262 = vmatpush1.bf16.msra.mxu0 0
        %1263 = vmatprep.subr.bf16.mxu0 0
        %1264 = vmatpush1.bf16.msra.mxu0 %v614
        %1265 = vmatprep.subr.bf16.mxu0 0
        %1266 = vmatpush1.bf16.msra.mxu0 %v613
        %1267 = vmatprep.subr.bf16.mxu0 0
        %1268 = vmatpush2.bf16.msra.mxu0 0
        %1269 = vmatprep.subr.bf16.mxu0 0
        %1270 = vmatpush2.bf16.msra.mxu0 0
        %1271 = vmatprep.subr.bf16.mxu0 0
        %1272 = vmatpush2.bf16.msra.mxu0 0
        %1273 = vmatprep.subr.bf16.mxu0 0
        %1274 = vmatpush2.bf16.msra.mxu0 0
        %1275 = vmatprep.subr.bf16.mxu0 0
        %1276 = vmatpush2.bf16.msra.mxu0 0
        %1277 = vmatprep.subr.bf16.mxu0 0
        %1278 = vmatpush2.bf16.msra.mxu0 0
        %1279 = vmatprep.subr.bf16.mxu0 0
        %1280 = vmatpush2.bf16.msra.mxu0 0
        %1281 = vmatprep.subr.bf16.mxu0 0
        %1282 = vmatpush2.bf16.msra.mxu0 0
        %1283 = vmatprep.mubr.bf16.mxu0 0
        %1284 = vmatmul.mubr.bf16.gmra.mxu0 %v1249
        %v1285 = vpop.f32.mrf.mxu0
        %v1286 = vadd.f32 %v595, %v1285
        %v1287 = vpop.f32.mrf.mxu0
        %v1288 = vpop.f32.mrf.mxu0
        %v1289 = vpop.f32.mrf.mxu0
        %1290 = vdwg.mxu0
        %v1291 = vadd.f32 %v1243, %v1286
        %v1292 = vxor.u32 %v1291, 2147483648
        %v1293 = vmul.f32 %v1292, 1.442695
        %v1294 = vpow.pop %v1293
        %v1295 = vadd.f32 %v1294, 1.0
        %v1296 = vrcp.pop %v1295
        %v1297 = vmul.f32 1.0, %v1296
        %1299 = vrot.lane.b32.xlu0 %v1286, 64
        %v1300 = vpop.permute.xlu0 %1299
        %v1302 = vmul.f32 %v1297, %v1300
        %1304 = vrot.lane.b32.xlu0 %v1302, 64
        %v1305 = vpop.permute.xlu0 %1304
        %v1307 = vadd.f32 %v1243, %v1305
        %v1308 = vtanh.pop %v1307
        %v1309 = vsub.f32 1.0, %v1297
        %1311 = vrot.lane.b32.xlu0 %v1308, 96
        %v1312 = vpop.permute.xlu0 %1311
        %v1314 = vmul.f32 %v1309, %v1312
        %v1315 = vmul.f32 %v1297, %v1237
        %v1316 = vadd.f32 %v1314, %v1315
        %v1317 = vstv %s1240
        %vm1318 = vcmp.lt.s32.totalorder %v1317, %v597
        %v1319 = vsel %vm1318, 1, 0
        %v1320 = vcvt.s32.f32 %v1319
        %1322 = vset.pattern.permute.xlu0 0
        %1323 = vperm.xlu0 %1322, %v1320
        %v1324 = vpop.permute.xlu0 %1323
        %v1326 = vmul.f32 %v1324, %v1316
        %1328 = vrot.lane.b32.xlu0 %v1326, 96
        %v1329 = vpop.permute.xlu0 %1328
        %s1331 = scalar_lea.vmem %s436, %s1241
        %1332 = vst.msk [vmem:[%s1331] sm:$0xff] %vm617, %v1329
        %v1333 = vsub.f32 1.0, %v1320
        %1335 = vset.pattern.permute.xlu0 0
        %1336 = vperm.xlu0 %1335, %v1333
        %v1337 = vpop.permute.xlu0 %1336
        %v1339 = vmul.f32 %v1337, %v1237
        %v1340 = vadd.f32 %v1326, %v1339
        %s1341 = smul.u32 %s450, 7
        %s1342 = sadd.s32 %s455, %s1341
        %s1343 = smul.u32 %s450, 56
        %s1344 = scalar_lea.vmem [#allocation2], %s1343
        %v1345 = vld [vmem:[%s1344] sm:$0xff]
        %v1346 = vpack.c.bf16 %v1340, %v1340
        %1348 = vrot.lane.b32.xlu0 %v1346, 96
        %v1349 = vpop.permute.xlu0 %1348
        %v1351 = vsel %vm617, %v1349, 0
        %1353 = vmatprep.subr.bf16.mxu0 0
        %1354 = vmatpush1.bf16.msra.mxu0 0
        %1355 = vmatprep.subr.bf16.mxu0 0
        %1356 = vmatpush1.bf16.msra.mxu0 0
        %1357 = vmatprep.subr.bf16.mxu0 0
        %1358 = vmatpush1.bf16.msra.mxu0 0
        %1359 = vmatprep.subr.bf16.mxu0 0
        %1360 = vmatpush1.bf16.msra.mxu0 0
        %1361 = vmatprep.subr.bf16.mxu0 0
        %1362 = vmatpush1.bf16.msra.mxu0 0
        %1363 = vmatprep.subr.bf16.mxu0 0
        %1364 = vmatpush1.bf16.msra.mxu0 0
        %1365 = vmatprep.subr.bf16.mxu0 0
        %1366 = vmatpush1.bf16.msra.mxu0 %v614
        %1367 = vmatprep.subr.bf16.mxu0 0
        %1368 = vmatpush1.bf16.msra.mxu0 %v613
        %1369 = vmatprep.subr.bf16.mxu0 0
        %1370 = vmatpush2.bf16.msra.mxu0 0
        %1371 = vmatprep.subr.bf16.mxu0 0
        %1372 = vmatpush2.bf16.msra.mxu0 0
        %1373 = vmatprep.subr.bf16.mxu0 0
        %1374 = vmatpush2.bf16.msra.mxu0 0
        %1375 = vmatprep.subr.bf16.mxu0 0
        %1376 = vmatpush2.bf16.msra.mxu0 0
        %1377 = vmatprep.subr.bf16.mxu0 0
        %1378 = vmatpush2.bf16.msra.mxu0 0
        %1379 = vmatprep.subr.bf16.mxu0 0
        %1380 = vmatpush2.bf16.msra.mxu0 0
        %1381 = vmatprep.subr.bf16.mxu0 0
        %1382 = vmatpush2.bf16.msra.mxu0 0
        %1383 = vmatprep.subr.bf16.mxu0 0
        %1384 = vmatpush2.bf16.msra.mxu0 0
        %1385 = vmatprep.mubr.bf16.mxu0 0
        %1386 = vmatmul.mubr.bf16.gmra.mxu0 %v1351
        %v1387 = vpop.f32.mrf.mxu0
        %v1388 = vadd.f32 %v595, %v1387
        %v1389 = vpop.f32.mrf.mxu0
        %v1390 = vpop.f32.mrf.mxu0
        %v1391 = vpop.f32.mrf.mxu0
        %1392 = vdwg.mxu0
        %v1393 = vadd.f32 %v1345, %v1388
        %v1394 = vxor.u32 %v1393, 2147483648
        %v1395 = vmul.f32 %v1394, 1.442695
        %v1396 = vpow.pop %v1395
        %v1397 = vadd.f32 %v1396, 1.0
        %v1398 = vrcp.pop %v1397
        %v1399 = vmul.f32 1.0, %v1398
        %1401 = vrot.lane.b32.xlu0 %v1388, 64
        %v1402 = vpop.permute.xlu0 %1401
        %v1404 = vmul.f32 %v1399, %v1402
        %1406 = vrot.lane.b32.xlu0 %v1404, 64
        %v1407 = vpop.permute.xlu0 %1406
        %v1409 = vadd.f32 %v1345, %v1407
        %v1410 = vtanh.pop %v1409
        %v1411 = vsub.f32 1.0, %v1399
        %1413 = vrot.lane.b32.xlu0 %v1410, 96
        %v1414 = vpop.permute.xlu0 %1413
        %v1416 = vmul.f32 %v1411, %v1414
        %v1417 = vmul.f32 %v1399, %v1340
        %v1418 = vadd.f32 %v1416, %v1417
        %v1419 = vstv %s1342
        %vm1420 = vcmp.lt.s32.totalorder %v1419, %v597
        %v1421 = vsel %vm1420, 1, 0
        %v1422 = vcvt.s32.f32 %v1421
        %1424 = vset.pattern.permute.xlu0 0
        %1425 = vperm.xlu0 %1424, %v1422
        %v1426 = vpop.permute.xlu0 %1425
        %v1428 = vmul.f32 %v1426, %v1418
        %1430 = vrot.lane.b32.xlu0 %v1428, 96
        %v1431 = vpop.permute.xlu0 %1430
        %s1433 = scalar_lea.vmem %s436, %s1343
        %1434 = vst.msk [vmem:[%s1433] sm:$0xff] %vm617, %v1431
        %v1435 = vsub.f32 1.0, %v1422
        %1437 = vset.pattern.permute.xlu0 0
        %1438 = vperm.xlu0 %1437, %v1435
        %v1439 = vpop.permute.xlu0 %1438
        %v1441 = vmul.f32 %v1439, %v1340
        %v1442 = vadd.f32 %v1428, %v1441
        %1444 = vrot.lane.b32.xlu0 %v1442, 96
        %v1445 = vpop.permute.xlu0 %1444
        %1447 = vst.msk [vmem:[#allocation3] sm:$0xff] %vm617, %v1445
        // Predicated region
        $region49: #{tpu_custom_call.1} parent=43 // pred_check
          %p1448 = pneg %p444
        $region50: #{tpu_custom_call.1} parent=43 // pred_check_branch
          %1450 = sbr.rel (%p1448) target = $region52
        $region51: #{tpu_custom_call.1} parent=43 // pred_region
          %1451 = vst.msk [vmem:[%s390] sm:$0xff] %vm617, %v1445
        $region52: #{tpu_custom_call.1} parent=43 // pred_fallthru
          _
        %s1452 = ssub.s32 1, %s26
        %s1453 = smul.u32 %s1452, %s27
        %s1454 = ssub.s32 0, %s27
        %s1455 = smul.u32 %s26, %s1454
        %s1456 = sadd.s32 %s1453, %s1455
        %s1457 = smul.u32 8, %s1456
        %p1458 = scmp.lt.s32.totalorder %s26, 1
        %s1459 = scalar_select %p1458, %s26, 1
        %p1460 = scmp.lt.s32.totalorder %s1457, 7
        %s1461 = scalar_select %p1460, %s1457, 7
        %s1462 = smul.addr %s1459, 8
        %s1463 = sadd.s32 %s1461, %s1462
        %s1464 = smul.addr %s1463, 8
        %s1465 = scalar_lea.vmem %s6, %s1464
        %s1466 = sand.u32 %s241, 1
        %s1467 = scalar_lea.sflag [#allocation5], %s1466
        %s1468 = sand.u32 %s241, 1
        %s1469 = smul.addr %s1468, 8
        %s1470 = scalar_lea.vmem [#allocation4], %s1469
        // Predicated region
        $region53: #{tpu_custom_call.1} parent=43 // pred_check
          %p1471 = pneg %p225
        $region54: #{tpu_custom_call.1} parent=43 // pred_check_branch
          %1473 = sbr.rel (%p1471) target = $region56
        $region55: #{tpu_custom_call.1} parent=43 // pred_region
          %s1474 = ssub.s32 1, %s26
          %s1475 = smul.u32 %s1474, %s27
          %s1476 = ssub.s32 0, %s27
          %s1477 = smul.u32 %s26, %s1476
          %s1478 = sadd.s32 %s1475, %s1477
          %s1479 = smul.u32 8, %s1478
        $region56: #{tpu_custom_call.1} parent=43 // pred_fallthru
          _
        // Predicated region
        $region57: #{tpu_custom_call.1} parent=43 // pred_check
          %p1480 = pneg %p251
        $region58: #{tpu_custom_call.1} parent=43 // pred_check_branch
          %1482 = sbr.rel (%p1480) target = $region60
        $region59: #{tpu_custom_call.1} parent=43 // pred_region
          %s1484 = ssub.s32 128, 128
          %1485 = vsyncadd %s1467, %s1484
          %s1486 = smul.addr %s26, 128
          %s1487 = scalar_lea.hbm %s7, %s1486
          %s1489 = sshll.u32 %s1470, 4
          %s1490 = int_to_ptr.vmem [resolvable:$true] %s1489
          %1492 = dma.vmem_to_hbm [thread:$0]  %s1490, 128, %s1487, %s1467
        $region60: #{tpu_custom_call.1} parent=43 // pred_fallthru
          _
      $region44: #{tpu_custom_call.1} parent=5 // pred_fallthru
        _
      %p1493 = scmp.le.s32.totalorder 2, %s17
      // Predicated region
      $region61: #{tpu_custom_call.1} parent=5 // pred_check
        %p1494 = pneg %p1493
      $region62: #{tpu_custom_call.1} parent=5 // pred_check_branch
        %1496 = sbr.rel (%p1494) target = $region64
      $region63: #{tpu_custom_call.1} parent=5 // pred_region
        %s1497 = ssub.s32 %s17, 2
        // Predicated region
        $region65: #{tpu_custom_call.1} parent=63 // pred_check
          %p1498 = pneg %p231
        $region66: #{tpu_custom_call.1} parent=63 // pred_check_branch
          %1500 = sbr.rel (%p1498) target = $region68
        $region67: #{tpu_custom_call.1} parent=63 // pred_region
          %s1501 = ssub.s32 1, %s28
          %s1502 = smul.u32 %s1501, %s29
          %s1503 = ssub.s32 0, %s29
          %s1504 = smul.u32 %s28, %s1503
          %s1505 = sadd.s32 %s1502, %s1504
          %s1506 = smul.u32 8, %s1505
          %p1507 = scmp.lt.s32.totalorder %s28, 1
          %s1508 = scalar_select %p1507, %s28, 1
          %p1509 = scmp.lt.s32.totalorder %s1506, 7
          %s1510 = scalar_select %p1509, %s1506, 7
          %s1511 = smul.addr %s1508, 8
          %s1512 = sadd.s32 %s1510, %s1511
          %s1513 = smul.addr %s1512, 8
          %s1514 = scalar_lea.vmem %s6, %s1513
        $region68: #{tpu_custom_call.1} parent=63 // pred_fallthru
          _
        // Predicated region
        $region69: #{tpu_custom_call.1} parent=63 // pred_check
          %p1515 = pneg %p257
        $region70: #{tpu_custom_call.1} parent=63 // pred_check_branch
          %1517 = sbr.rel (%p1515) target = $region72
        $region71: #{tpu_custom_call.1} parent=63 // pred_region
          %s1518 = sand.u32 %s242, 1
          %s1519 = scalar_lea.sflag [#allocation5], %s1518
          %s1520 = sand.u32 %s242, 1
          %s1521 = smul.addr %s1520, 8
          %s1522 = scalar_lea.vmem [#allocation4], %s1521
          %1523 = dma.done %s1519, 128
        $region72: #{tpu_custom_call.1} parent=63 // pred_fallthru
          _
      $region64: #{tpu_custom_call.1} parent=5 // pred_fallthru
        _
    $region6: #{tpu_custom_call.1} parent=1 // loop_footer
      %s21 = sadd.s32 1, %s17
    $region7: #{tpu_custom_call.1} parent=1 // loop_footer_branch
      %16 = sbr.rel target = $region3
    $region8: #{tpu_custom_call.1} parent=1 // loop_exit
      _
    %1524 = vsyncpa [#allocation5], 1
    %s1525 = scalar_lea.sflag [#allocation5], 1
    %1526 = vsyncpa %s1525, 1

</llo_original>
